<compile_context>
chip_gen: v5e
topology: v5e:2x2
jax: 0.10.0
libtpu: 0.0.40
codegen_flags: <defaults>
</compile_context>

<pallas_src>
import jax
import jax.numpy as jnp
from jax import lax
from jax.experimental import pallas as pl
from jax.experimental.pallas import tpu as pltpu


CHUNK_ROWS = 16      # 16 sublane-rows * 128 lanes = 2048 batch elements per inner chunk
MAX_TILE_ROWS = 512  # 512 rows * 128 lanes = 65536 batch elements (~2.5 MiB of x) / step


def _round_up(x, m):
    return ((x + m - 1) // m) * m


def sensornet_kernel(x_ref, w1_ref, b1_ref, w2_ref, b2_ref, o_ref):
    # x_ref : [IN, TBR, 128] f32 in VMEM  (batch on the sublane/lane axes)
    # w1_ref: [IN*H] f32 SMEM (row-major, index i*H + j)
    # b1_ref: [H]    f32 SMEM
    # w2_ref: [H]    f32 SMEM
    # b2_ref: [1]    f32 SMEM
    # o_ref : [TBR, 128] f32
    in_features = x_ref.shape[0]
    tile_rows = x_ref.shape[1]
    hidden = b1_ref.shape[0]

    cr = CHUNK_ROWS if tile_rows >= CHUNK_ROWS else tile_rows
    n_chunks = tile_rows // cr

    # Hoist every scalar weight read out of the chunk loop (SMEM -> sregs).
    w1_s = [[w1_ref[i * hidden + j] for j in range(hidden)] for i in range(in_features)]
    b1_s = [b1_ref[j] for j in range(hidden)]
    w2_s = [w2_ref[j] for j in range(hidden)]
    b2_s = b2_ref[0]

    def chunk_body(c, carry):
        r0 = pl.multiple_of(c * cr, cr)
        # IN dense [cr, 128] slabs of the batch chunk (each = cr/8 vregs).
        xs = [x_ref[i, pl.ds(r0, cr), :] for i in range(in_features)]
        acc = None
        for j in range(hidden):
            # fc1 hidden unit j: broadcast-scalar MAC chain on the VPU.
            h = xs[0] * w1_s[0][j]
            for i in range(1, in_features):
                h = h + xs[i] * w1_s[i][j]
            h = jnp.maximum(h + b1_s[j], 0.0)          # bias + ReLU
            # fc2 (out_features == 1): accumulate w2[j] * h_j.
            contrib = h * w2_s[j]
            acc = contrib if acc is None else acc + contrib
        o_ref[pl.ds(r0, cr), :] = acc + b2_s
        return carry

    lax.fori_loop(0, n_chunks, chunk_body, None)


def sensornet_forward(x, w1, b1, w2, b2):
    """x: [B, in]; w1: [in, hidden]; b1: [hidden]-like; w2: [hidden, 1]-like; b2: scalar-like."""
    B, in_features = x.shape
    hidden = w1.shape[1]

    # ---- tiling: batch lives on (sublane-rows, 128 lanes) ----
    rows = pl.cdiv(B, 128)
    n_steps = max(1, pl.cdiv(rows, MAX_TILE_ROWS))
    if n_steps == 1 and rows >= 2 * CHUNK_ROWS:
        n_steps = 2                      # let both v7x TensorCores work
    if n_steps > 1 and n_steps % 2 == 1:
        n_steps += 1                     # balanced split across 2 TCs
    tile_rows = max(CHUNK_ROWS, _round_up(pl.cdiv(rows, n_steps), CHUNK_ROWS))
    rows_pad = n_steps * tile_rows
    b_pad = rows_pad * 128

    # ---- feature-major layout: x[B, IN] -> xT[IN, rows_pad, 128] (stays f32) ----
    x_f32 = x.astype(jnp.float32)
    xT = jnp.pad(x_f32, ((0, b_pad - B), (0, 0))).T.reshape(in_features, rows_pad, 128)

    # Weights / biases as flat SMEM scalars (flatten -> minimal SMEM padding).
    w1_flat = jnp.asarray(w1, jnp.float32).reshape(in_features * hidden)
    b1_flat = jnp.asarray(b1, jnp.float32).reshape(hidden)
    w2_flat = jnp.asarray(w2, jnp.float32).reshape(hidden)
    b2_flat = jnp.asarray(b2, jnp.float32).reshape(1)

    out2 = pl.pallas_call(
        sensornet_kernel,
        out_shape=jax.ShapeDtypeStruct((rows_pad, 128), jnp.float32),
        grid=(n_steps,),
        in_specs=[
            pl.BlockSpec((in_features, tile_rows, 128), lambda s: (0, s, 0)),  # x: streamed
            pl.BlockSpec(memory_space=pltpu.MemorySpace.SMEM),                  # w1 scalars
            pl.BlockSpec(memory_space=pltpu.MemorySpace.SMEM),                  # b1 scalars
            pl.BlockSpec(memory_space=pltpu.MemorySpace.SMEM),                  # w2 scalars
            pl.BlockSpec(memory_space=pltpu.MemorySpace.SMEM),                  # b2 scalar
        ],
        out_specs=pl.BlockSpec((tile_rows, 128), lambda s: (s, 0)),             # lane-dense
        compiler_params=pltpu.CompilerParams(
            dimension_semantics=("parallel",),
        ),
    )(xT, w1_flat, b1_flat, w2_flat, b2_flat)

    # Drop the padded rows (their values are relu(b1)@w2 + b2 garbage) and restore [B, 1].
    return out2.reshape(-1)[:B].reshape(B, 1)


def init_params(key, input_size=10, hidden=16):
    # Deterministic synthetic init (PyTorch-Linear-like uniform bounds), all f32.
    k1, k2, k3, k4 = jax.random.split(key, 4)
    bound1 = 1.0 / (input_size ** 0.5)
    bound2 = 1.0 / (hidden ** 0.5)
    w1 = jax.random.uniform(k1, (input_size, hidden), jnp.float32, -bound1, bound1)
    b1 = jax.random.uniform(k2, (hidden,), jnp.float32, -bound1, bound1)
    w2 = jax.random.uniform(k3, (hidden, 1), jnp.float32, -bound2, bound2)
    b2 = jax.random.uniform(k4, (1,), jnp.float32, -bound2, bound2)
    return w1, b1, w2, b2


def _reference(x, w1, b1, w2, b2):
    h = jnp.maximum(x @ w1 + b1.reshape(1, -1), 0.0)
    return h @ w2.reshape(-1, 1) + b2.reshape(1, 1)


if __name__ == "__main__":
    key = jax.random.PRNGKey(0)
    k_x, k_x2, k_p = jax.random.split(key, 3)

    input_size, hidden = 10, 16
    w1, b1, w2, b2 = init_params(k_p, input_size=input_size, hidden=hidden)

    # Small shape implied by the module: [batch, input_size].
    batch = 8
    x = jax.random.normal(k_x, (batch, input_size), jnp.float32)
    out = sensornet_forward(x, w1, b1, w2, b2)
    jax.block_until_ready(out)
    ref = _reference(x, w1, b1, w2, b2)
    assert out.shape == (batch, 1)
    assert jnp.allclose(out, ref, atol=1e-4, rtol=1e-4), float(jnp.max(jnp.abs(out - ref)))

    # Second check that exercises the multi-step grid + multi-chunk inner loop.
    batch2 = 4500
    x2 = jax.random.normal(k_x2, (batch2, input_size), jnp.float32)
    out2 = sensornet_forward(x2, w1, b1, w2, b2)
    jax.block_until_ready(out2)
    ref2 = _reference(x2, w1, b1, w2, b2)
    assert out2.shape == (batch2, 1)
    assert jnp.allclose(out2, ref2, atol=1e-4, rtol=1e-4), float(jnp.max(jnp.abs(out2 - ref2)))

    print("KERNEL_OK")
</pallas_src>

<mosaic_0001>
module attributes {stable_mosaic.version = 11 : i64} {
  func.func @sensornet_kernel(%arg0: i32, %arg1: memref<10x16x128xf32, #tpu.memory_space<vmem>>, %arg2: memref<160xf32, #tpu.memory_space<smem>>, %arg3: memref<16xf32, #tpu.memory_space<smem>>, %arg4: memref<16xf32, #tpu.memory_space<smem>>, %arg5: memref<1xf32, #tpu.memory_space<smem>>, %arg6: memref<16x128xf32, #tpu.memory_space<vmem>>) attributes {dimension_semantics = [#tpu.dimension_semantics<parallel>], iteration_bounds = array<i64: 1>, scalar_prefetch = 0 : i64, scratch_operands = 0 : i64, tpu.core_type = #tpu.core_type<tc>, window_params = [{transform_indices = @transform_0, window_bounds = array<i64: 10, 16, 128>}, {transform_indices = @transform_1, window_bounds = array<i64: 160>}, {transform_indices = @transform_2, window_bounds = array<i64: 16>}, {transform_indices = @transform_3, window_bounds = array<i64: 16>}, {transform_indices = @transform_4, window_bounds = array<i64: 1>}, {transform_indices = @transform_5, window_bounds = array<i64: 16, 128>}]} {
    %c0 = arith.constant 0 : index
    %0 = memref.load %arg2[%c0] : memref<160xf32, #tpu.memory_space<smem>>
    %c1 = arith.constant 1 : index
    %1 = memref.load %arg2[%c1] : memref<160xf32, #tpu.memory_space<smem>>
    %c2 = arith.constant 2 : index
    %2 = memref.load %arg2[%c2] : memref<160xf32, #tpu.memory_space<smem>>
    %c3 = arith.constant 3 : index
    %3 = memref.load %arg2[%c3] : memref<160xf32, #tpu.memory_space<smem>>
    %c4 = arith.constant 4 : index
    %4 = memref.load %arg2[%c4] : memref<160xf32, #tpu.memory_space<smem>>
    %c5 = arith.constant 5 : index
    %5 = memref.load %arg2[%c5] : memref<160xf32, #tpu.memory_space<smem>>
    %c6 = arith.constant 6 : index
    %6 = memref.load %arg2[%c6] : memref<160xf32, #tpu.memory_space<smem>>
    %c7 = arith.constant 7 : index
    %7 = memref.load %arg2[%c7] : memref<160xf32, #tpu.memory_space<smem>>
    %c8 = arith.constant 8 : index
    %8 = memref.load %arg2[%c8] : memref<160xf32, #tpu.memory_space<smem>>
    %c9 = arith.constant 9 : index
    %9 = memref.load %arg2[%c9] : memref<160xf32, #tpu.memory_space<smem>>
    %c10 = arith.constant 10 : index
    %10 = memref.load %arg2[%c10] : memref<160xf32, #tpu.memory_space<smem>>
    %c11 = arith.constant 11 : index
    %11 = memref.load %arg2[%c11] : memref<160xf32, #tpu.memory_space<smem>>
    %c12 = arith.constant 12 : index
    %12 = memref.load %arg2[%c12] : memref<160xf32, #tpu.memory_space<smem>>
    %c13 = arith.constant 13 : index
    %13 = memref.load %arg2[%c13] : memref<160xf32, #tpu.memory_space<smem>>
    %c14 = arith.constant 14 : index
    %14 = memref.load %arg2[%c14] : memref<160xf32, #tpu.memory_space<smem>>
    %c15 = arith.constant 15 : index
    %15 = memref.load %arg2[%c15] : memref<160xf32, #tpu.memory_space<smem>>
    %c16 = arith.constant 16 : index
    %16 = memref.load %arg2[%c16] : memref<160xf32, #tpu.memory_space<smem>>
    %c17 = arith.constant 17 : index
    %17 = memref.load %arg2[%c17] : memref<160xf32, #tpu.memory_space<smem>>
    %c18 = arith.constant 18 : index
    %18 = memref.load %arg2[%c18] : memref<160xf32, #tpu.memory_space<smem>>
    %c19 = arith.constant 19 : index
    %19 = memref.load %arg2[%c19] : memref<160xf32, #tpu.memory_space<smem>>
    %c20 = arith.constant 20 : index
    %20 = memref.load %arg2[%c20] : memref<160xf32, #tpu.memory_space<smem>>
    %c21 = arith.constant 21 : index
    %21 = memref.load %arg2[%c21] : memref<160xf32, #tpu.memory_space<smem>>
    %c22 = arith.constant 22 : index
    %22 = memref.load %arg2[%c22] : memref<160xf32, #tpu.memory_space<smem>>
    %c23 = arith.constant 23 : index
    %23 = memref.load %arg2[%c23] : memref<160xf32, #tpu.memory_space<smem>>
    %c24 = arith.constant 24 : index
    %24 = memref.load %arg2[%c24] : memref<160xf32, #tpu.memory_space<smem>>
    %c25 = arith.constant 25 : index
    %25 = memref.load %arg2[%c25] : memref<160xf32, #tpu.memory_space<smem>>
    %c26 = arith.constant 26 : index
    %26 = memref.load %arg2[%c26] : memref<160xf32, #tpu.memory_space<smem>>
    %c27 = arith.constant 27 : index
    %27 = memref.load %arg2[%c27] : memref<160xf32, #tpu.memory_space<smem>>
    %c28 = arith.constant 28 : index
    %28 = memref.load %arg2[%c28] : memref<160xf32, #tpu.memory_space<smem>>
    %c29 = arith.constant 29 : index
    %29 = memref.load %arg2[%c29] : memref<160xf32, #tpu.memory_space<smem>>
    %c30 = arith.constant 30 : index
    %30 = memref.load %arg2[%c30] : memref<160xf32, #tpu.memory_space<smem>>
    %c31 = arith.constant 31 : index
    %31 = memref.load %arg2[%c31] : memref<160xf32, #tpu.memory_space<smem>>
    %c32 = arith.constant 32 : index
    %32 = memref.load %arg2[%c32] : memref<160xf32, #tpu.memory_space<smem>>
    %c33 = arith.constant 33 : index
    %33 = memref.load %arg2[%c33] : memref<160xf32, #tpu.memory_space<smem>>
    %c34 = arith.constant 34 : index
    %34 = memref.load %arg2[%c34] : memref<160xf32, #tpu.memory_space<smem>>
    %c35 = arith.constant 35 : index
    %35 = memref.load %arg2[%c35] : memref<160xf32, #tpu.memory_space<smem>>
    %c36 = arith.constant 36 : index
    %36 = memref.load %arg2[%c36] : memref<160xf32, #tpu.memory_space<smem>>
    %c37 = arith.constant 37 : index
    %37 = memref.load %arg2[%c37] : memref<160xf32, #tpu.memory_space<smem>>
    %c38 = arith.constant 38 : index
    %38 = memref.load %arg2[%c38] : memref<160xf32, #tpu.memory_space<smem>>
    %c39 = arith.constant 39 : index
    %39 = memref.load %arg2[%c39] : memref<160xf32, #tpu.memory_space<smem>>
    %c40 = arith.constant 40 : index
    %40 = memref.load %arg2[%c40] : memref<160xf32, #tpu.memory_space<smem>>
    %c41 = arith.constant 41 : index
    %41 = memref.load %arg2[%c41] : memref<160xf32, #tpu.memory_space<smem>>
    %c42 = arith.constant 42 : index
    %42 = memref.load %arg2[%c42] : memref<160xf32, #tpu.memory_space<smem>>
    %c43 = arith.constant 43 : index
    %43 = memref.load %arg2[%c43] : memref<160xf32, #tpu.memory_space<smem>>
    %c44 = arith.constant 44 : index
    %44 = memref.load %arg2[%c44] : memref<160xf32, #tpu.memory_space<smem>>
    %c45 = arith.constant 45 : index
    %45 = memref.load %arg2[%c45] : memref<160xf32, #tpu.memory_space<smem>>
    %c46 = arith.constant 46 : index
    %46 = memref.load %arg2[%c46] : memref<160xf32, #tpu.memory_space<smem>>
    %c47 = arith.constant 47 : index
    %47 = memref.load %arg2[%c47] : memref<160xf32, #tpu.memory_space<smem>>
    %c48 = arith.constant 48 : index
    %48 = memref.load %arg2[%c48] : memref<160xf32, #tpu.memory_space<smem>>
    %c49 = arith.constant 49 : index
    %49 = memref.load %arg2[%c49] : memref<160xf32, #tpu.memory_space<smem>>
    %c50 = arith.constant 50 : index
    %50 = memref.load %arg2[%c50] : memref<160xf32, #tpu.memory_space<smem>>
    %c51 = arith.constant 51 : index
    %51 = memref.load %arg2[%c51] : memref<160xf32, #tpu.memory_space<smem>>
    %c52 = arith.constant 52 : index
    %52 = memref.load %arg2[%c52] : memref<160xf32, #tpu.memory_space<smem>>
    %c53 = arith.constant 53 : index
    %53 = memref.load %arg2[%c53] : memref<160xf32, #tpu.memory_space<smem>>
    %c54 = arith.constant 54 : index
    %54 = memref.load %arg2[%c54] : memref<160xf32, #tpu.memory_space<smem>>
    %c55 = arith.constant 55 : index
    %55 = memref.load %arg2[%c55] : memref<160xf32, #tpu.memory_space<smem>>
    %c56 = arith.constant 56 : index
    %56 = memref.load %arg2[%c56] : memref<160xf32, #tpu.memory_space<smem>>
    %c57 = arith.constant 57 : index
    %57 = memref.load %arg2[%c57] : memref<160xf32, #tpu.memory_space<smem>>
    %c58 = arith.constant 58 : index
    %58 = memref.load %arg2[%c58] : memref<160xf32, #tpu.memory_space<smem>>
    %c59 = arith.constant 59 : index
    %59 = memref.load %arg2[%c59] : memref<160xf32, #tpu.memory_space<smem>>
    %c60 = arith.constant 60 : index
    %60 = memref.load %arg2[%c60] : memref<160xf32, #tpu.memory_space<smem>>
    %c61 = arith.constant 61 : index
    %61 = memref.load %arg2[%c61] : memref<160xf32, #tpu.memory_space<smem>>
    %c62 = arith.constant 62 : index
    %62 = memref.load %arg2[%c62] : memref<160xf32, #tpu.memory_space<smem>>
    %c63 = arith.constant 63 : index
    %63 = memref.load %arg2[%c63] : memref<160xf32, #tpu.memory_space<smem>>
    %c64 = arith.constant 64 : index
    %64 = memref.load %arg2[%c64] : memref<160xf32, #tpu.memory_space<smem>>
    %c65 = arith.constant 65 : index
    %65 = memref.load %arg2[%c65] : memref<160xf32, #tpu.memory_space<smem>>
    %c66 = arith.constant 66 : index
    %66 = memref.load %arg2[%c66] : memref<160xf32, #tpu.memory_space<smem>>
    %c67 = arith.constant 67 : index
    %67 = memref.load %arg2[%c67] : memref<160xf32, #tpu.memory_space<smem>>
    %c68 = arith.constant 68 : index
    %68 = memref.load %arg2[%c68] : memref<160xf32, #tpu.memory_space<smem>>
    %c69 = arith.constant 69 : index
    %69 = memref.load %arg2[%c69] : memref<160xf32, #tpu.memory_space<smem>>
    %c70 = arith.constant 70 : index
    %70 = memref.load %arg2[%c70] : memref<160xf32, #tpu.memory_space<smem>>
    %c71 = arith.constant 71 : index
    %71 = memref.load %arg2[%c71] : memref<160xf32, #tpu.memory_space<smem>>
    %c72 = arith.constant 72 : index
    %72 = memref.load %arg2[%c72] : memref<160xf32, #tpu.memory_space<smem>>
    %c73 = arith.constant 73 : index
    %73 = memref.load %arg2[%c73] : memref<160xf32, #tpu.memory_space<smem>>
    %c74 = arith.constant 74 : index
    %74 = memref.load %arg2[%c74] : memref<160xf32, #tpu.memory_space<smem>>
    %c75 = arith.constant 75 : index
    %75 = memref.load %arg2[%c75] : memref<160xf32, #tpu.memory_space<smem>>
    %c76 = arith.constant 76 : index
    %76 = memref.load %arg2[%c76] : memref<160xf32, #tpu.memory_space<smem>>
    %c77 = arith.constant 77 : index
    %77 = memref.load %arg2[%c77] : memref<160xf32, #tpu.memory_space<smem>>
    %c78 = arith.constant 78 : index
    %78 = memref.load %arg2[%c78] : memref<160xf32, #tpu.memory_space<smem>>
    %c79 = arith.constant 79 : index
    %79 = memref.load %arg2[%c79] : memref<160xf32, #tpu.memory_space<smem>>
    %c80 = arith.constant 80 : index
    %80 = memref.load %arg2[%c80] : memref<160xf32, #tpu.memory_space<smem>>
    %c81 = arith.constant 81 : index
    %81 = memref.load %arg2[%c81] : memref<160xf32, #tpu.memory_space<smem>>
    %c82 = arith.constant 82 : index
    %82 = memref.load %arg2[%c82] : memref<160xf32, #tpu.memory_space<smem>>
    %c83 = arith.constant 83 : index
    %83 = memref.load %arg2[%c83] : memref<160xf32, #tpu.memory_space<smem>>
    %c84 = arith.constant 84 : index
    %84 = memref.load %arg2[%c84] : memref<160xf32, #tpu.memory_space<smem>>
    %c85 = arith.constant 85 : index
    %85 = memref.load %arg2[%c85] : memref<160xf32, #tpu.memory_space<smem>>
    %c86 = arith.constant 86 : index
    %86 = memref.load %arg2[%c86] : memref<160xf32, #tpu.memory_space<smem>>
    %c87 = arith.constant 87 : index
    %87 = memref.load %arg2[%c87] : memref<160xf32, #tpu.memory_space<smem>>
    %c88 = arith.constant 88 : index
    %88 = memref.load %arg2[%c88] : memref<160xf32, #tpu.memory_space<smem>>
    %c89 = arith.constant 89 : index
    %89 = memref.load %arg2[%c89] : memref<160xf32, #tpu.memory_space<smem>>
    %c90 = arith.constant 90 : index
    %90 = memref.load %arg2[%c90] : memref<160xf32, #tpu.memory_space<smem>>
    %c91 = arith.constant 91 : index
    %91 = memref.load %arg2[%c91] : memref<160xf32, #tpu.memory_space<smem>>
    %c92 = arith.constant 92 : index
    %92 = memref.load %arg2[%c92] : memref<160xf32, #tpu.memory_space<smem>>
    %c93 = arith.constant 93 : index
    %93 = memref.load %arg2[%c93] : memref<160xf32, #tpu.memory_space<smem>>
    %c94 = arith.constant 94 : index
    %94 = memref.load %arg2[%c94] : memref<160xf32, #tpu.memory_space<smem>>
    %c95 = arith.constant 95 : index
    %95 = memref.load %arg2[%c95] : memref<160xf32, #tpu.memory_space<smem>>
    %c96 = arith.constant 96 : index
    %96 = memref.load %arg2[%c96] : memref<160xf32, #tpu.memory_space<smem>>
    %c97 = arith.constant 97 : index
    %97 = memref.load %arg2[%c97] : memref<160xf32, #tpu.memory_space<smem>>
    %c98 = arith.constant 98 : index
    %98 = memref.load %arg2[%c98] : memref<160xf32, #tpu.memory_space<smem>>
    %c99 = arith.constant 99 : index
    %99 = memref.load %arg2[%c99] : memref<160xf32, #tpu.memory_space<smem>>
    %c100 = arith.constant 100 : index
    %100 = memref.load %arg2[%c100] : memref<160xf32, #tpu.memory_space<smem>>
    %c101 = arith.constant 101 : index
    %101 = memref.load %arg2[%c101] : memref<160xf32, #tpu.memory_space<smem>>
    %c102 = arith.constant 102 : index
    %102 = memref.load %arg2[%c102] : memref<160xf32, #tpu.memory_space<smem>>
    %c103 = arith.constant 103 : index
    %103 = memref.load %arg2[%c103] : memref<160xf32, #tpu.memory_space<smem>>
    %c104 = arith.constant 104 : index
    %104 = memref.load %arg2[%c104] : memref<160xf32, #tpu.memory_space<smem>>
    %c105 = arith.constant 105 : index
    %105 = memref.load %arg2[%c105] : memref<160xf32, #tpu.memory_space<smem>>
    %c106 = arith.constant 106 : index
    %106 = memref.load %arg2[%c106] : memref<160xf32, #tpu.memory_space<smem>>
    %c107 = arith.constant 107 : index
    %107 = memref.load %arg2[%c107] : memref<160xf32, #tpu.memory_space<smem>>
    %c108 = arith.constant 108 : index
    %108 = memref.load %arg2[%c108] : memref<160xf32, #tpu.memory_space<smem>>
    %c109 = arith.constant 109 : index
    %109 = memref.load %arg2[%c109] : memref<160xf32, #tpu.memory_space<smem>>
    %c110 = arith.constant 110 : index
    %110 = memref.load %arg2[%c110] : memref<160xf32, #tpu.memory_space<smem>>
    %c111 = arith.constant 111 : index
    %111 = memref.load %arg2[%c111] : memref<160xf32, #tpu.memory_space<smem>>
    %c112 = arith.constant 112 : index
    %112 = memref.load %arg2[%c112] : memref<160xf32, #tpu.memory_space<smem>>
    %c113 = arith.constant 113 : index
    %113 = memref.load %arg2[%c113] : memref<160xf32, #tpu.memory_space<smem>>
    %c114 = arith.constant 114 : index
    %114 = memref.load %arg2[%c114] : memref<160xf32, #tpu.memory_space<smem>>
    %c115 = arith.constant 115 : index
    %115 = memref.load %arg2[%c115] : memref<160xf32, #tpu.memory_space<smem>>
    %c116 = arith.constant 116 : index
    %116 = memref.load %arg2[%c116] : memref<160xf32, #tpu.memory_space<smem>>
    %c117 = arith.constant 117 : index
    %117 = memref.load %arg2[%c117] : memref<160xf32, #tpu.memory_space<smem>>
    %c118 = arith.constant 118 : index
    %118 = memref.load %arg2[%c118] : memref<160xf32, #tpu.memory_space<smem>>
    %c119 = arith.constant 119 : index
    %119 = memref.load %arg2[%c119] : memref<160xf32, #tpu.memory_space<smem>>
    %c120 = arith.constant 120 : index
    %120 = memref.load %arg2[%c120] : memref<160xf32, #tpu.memory_space<smem>>
    %c121 = arith.constant 121 : index
    %121 = memref.load %arg2[%c121] : memref<160xf32, #tpu.memory_space<smem>>
    %c122 = arith.constant 122 : index
    %122 = memref.load %arg2[%c122] : memref<160xf32, #tpu.memory_space<smem>>
    %c123 = arith.constant 123 : index
    %123 = memref.load %arg2[%c123] : memref<160xf32, #tpu.memory_space<smem>>
    %c124 = arith.constant 124 : index
    %124 = memref.load %arg2[%c124] : memref<160xf32, #tpu.memory_space<smem>>
    %c125 = arith.constant 125 : index
    %125 = memref.load %arg2[%c125] : memref<160xf32, #tpu.memory_space<smem>>
    %c126 = arith.constant 126 : index
    %126 = memref.load %arg2[%c126] : memref<160xf32, #tpu.memory_space<smem>>
    %c127 = arith.constant 127 : index
    %127 = memref.load %arg2[%c127] : memref<160xf32, #tpu.memory_space<smem>>
    %c128 = arith.constant 128 : index
    %128 = memref.load %arg2[%c128] : memref<160xf32, #tpu.memory_space<smem>>
    %c129 = arith.constant 129 : index
    %129 = memref.load %arg2[%c129] : memref<160xf32, #tpu.memory_space<smem>>
    %c130 = arith.constant 130 : index
    %130 = memref.load %arg2[%c130] : memref<160xf32, #tpu.memory_space<smem>>
    %c131 = arith.constant 131 : index
    %131 = memref.load %arg2[%c131] : memref<160xf32, #tpu.memory_space<smem>>
    %c132 = arith.constant 132 : index
    %132 = memref.load %arg2[%c132] : memref<160xf32, #tpu.memory_space<smem>>
    %c133 = arith.constant 133 : index
    %133 = memref.load %arg2[%c133] : memref<160xf32, #tpu.memory_space<smem>>
    %c134 = arith.constant 134 : index
    %134 = memref.load %arg2[%c134] : memref<160xf32, #tpu.memory_space<smem>>
    %c135 = arith.constant 135 : index
    %135 = memref.load %arg2[%c135] : memref<160xf32, #tpu.memory_space<smem>>
    %c136 = arith.constant 136 : index
    %136 = memref.load %arg2[%c136] : memref<160xf32, #tpu.memory_space<smem>>
    %c137 = arith.constant 137 : index
    %137 = memref.load %arg2[%c137] : memref<160xf32, #tpu.memory_space<smem>>
    %c138 = arith.constant 138 : index
    %138 = memref.load %arg2[%c138] : memref<160xf32, #tpu.memory_space<smem>>
    %c139 = arith.constant 139 : index
    %139 = memref.load %arg2[%c139] : memref<160xf32, #tpu.memory_space<smem>>
    %c140 = arith.constant 140 : index
    %140 = memref.load %arg2[%c140] : memref<160xf32, #tpu.memory_space<smem>>
    %c141 = arith.constant 141 : index
    %141 = memref.load %arg2[%c141] : memref<160xf32, #tpu.memory_space<smem>>
    %c142 = arith.constant 142 : index
    %142 = memref.load %arg2[%c142] : memref<160xf32, #tpu.memory_space<smem>>
    %c143 = arith.constant 143 : index
    %143 = memref.load %arg2[%c143] : memref<160xf32, #tpu.memory_space<smem>>
    %c144 = arith.constant 144 : index
    %144 = memref.load %arg2[%c144] : memref<160xf32, #tpu.memory_space<smem>>
    %c145 = arith.constant 145 : index
    %145 = memref.load %arg2[%c145] : memref<160xf32, #tpu.memory_space<smem>>
    %c146 = arith.constant 146 : index
    %146 = memref.load %arg2[%c146] : memref<160xf32, #tpu.memory_space<smem>>
    %c147 = arith.constant 147 : index
    %147 = memref.load %arg2[%c147] : memref<160xf32, #tpu.memory_space<smem>>
    %c148 = arith.constant 148 : index
    %148 = memref.load %arg2[%c148] : memref<160xf32, #tpu.memory_space<smem>>
    %c149 = arith.constant 149 : index
    %149 = memref.load %arg2[%c149] : memref<160xf32, #tpu.memory_space<smem>>
    %c150 = arith.constant 150 : index
    %150 = memref.load %arg2[%c150] : memref<160xf32, #tpu.memory_space<smem>>
    %c151 = arith.constant 151 : index
    %151 = memref.load %arg2[%c151] : memref<160xf32, #tpu.memory_space<smem>>
    %c152 = arith.constant 152 : index
    %152 = memref.load %arg2[%c152] : memref<160xf32, #tpu.memory_space<smem>>
    %c153 = arith.constant 153 : index
    %153 = memref.load %arg2[%c153] : memref<160xf32, #tpu.memory_space<smem>>
    %c154 = arith.constant 154 : index
    %154 = memref.load %arg2[%c154] : memref<160xf32, #tpu.memory_space<smem>>
    %c155 = arith.constant 155 : index
    %155 = memref.load %arg2[%c155] : memref<160xf32, #tpu.memory_space<smem>>
    %c156 = arith.constant 156 : index
    %156 = memref.load %arg2[%c156] : memref<160xf32, #tpu.memory_space<smem>>
    %c157 = arith.constant 157 : index
    %157 = memref.load %arg2[%c157] : memref<160xf32, #tpu.memory_space<smem>>
    %c158 = arith.constant 158 : index
    %158 = memref.load %arg2[%c158] : memref<160xf32, #tpu.memory_space<smem>>
    %c159 = arith.constant 159 : index
    %159 = memref.load %arg2[%c159] : memref<160xf32, #tpu.memory_space<smem>>
    %c0_0 = arith.constant 0 : index
    %160 = memref.load %arg3[%c0_0] : memref<16xf32, #tpu.memory_space<smem>>
    %c1_1 = arith.constant 1 : index
    %161 = memref.load %arg3[%c1_1] : memref<16xf32, #tpu.memory_space<smem>>
    %c2_2 = arith.constant 2 : index
    %162 = memref.load %arg3[%c2_2] : memref<16xf32, #tpu.memory_space<smem>>
    %c3_3 = arith.constant 3 : index
    %163 = memref.load %arg3[%c3_3] : memref<16xf32, #tpu.memory_space<smem>>
    %c4_4 = arith.constant 4 : index
    %164 = memref.load %arg3[%c4_4] : memref<16xf32, #tpu.memory_space<smem>>
    %c5_5 = arith.constant 5 : index
    %165 = memref.load %arg3[%c5_5] : memref<16xf32, #tpu.memory_space<smem>>
    %c6_6 = arith.constant 6 : index
    %166 = memref.load %arg3[%c6_6] : memref<16xf32, #tpu.memory_space<smem>>
    %c7_7 = arith.constant 7 : index
    %167 = memref.load %arg3[%c7_7] : memref<16xf32, #tpu.memory_space<smem>>
    %c8_8 = arith.constant 8 : index
    %168 = memref.load %arg3[%c8_8] : memref<16xf32, #tpu.memory_space<smem>>
    %c9_9 = arith.constant 9 : index
    %169 = memref.load %arg3[%c9_9] : memref<16xf32, #tpu.memory_space<smem>>
    %c10_10 = arith.constant 10 : index
    %170 = memref.load %arg3[%c10_10] : memref<16xf32, #tpu.memory_space<smem>>
    %c11_11 = arith.constant 11 : index
    %171 = memref.load %arg3[%c11_11] : memref<16xf32, #tpu.memory_space<smem>>
    %c12_12 = arith.constant 12 : index
    %172 = memref.load %arg3[%c12_12] : memref<16xf32, #tpu.memory_space<smem>>
    %c13_13 = arith.constant 13 : index
    %173 = memref.load %arg3[%c13_13] : memref<16xf32, #tpu.memory_space<smem>>
    %c14_14 = arith.constant 14 : index
    %174 = memref.load %arg3[%c14_14] : memref<16xf32, #tpu.memory_space<smem>>
    %c15_15 = arith.constant 15 : index
    %175 = memref.load %arg3[%c15_15] : memref<16xf32, #tpu.memory_space<smem>>
    %c0_16 = arith.constant 0 : index
    %176 = memref.load %arg4[%c0_16] : memref<16xf32, #tpu.memory_space<smem>>
    %c1_17 = arith.constant 1 : index
    %177 = memref.load %arg4[%c1_17] : memref<16xf32, #tpu.memory_space<smem>>
    %c2_18 = arith.constant 2 : index
    %178 = memref.load %arg4[%c2_18] : memref<16xf32, #tpu.memory_space<smem>>
    %c3_19 = arith.constant 3 : index
    %179 = memref.load %arg4[%c3_19] : memref<16xf32, #tpu.memory_space<smem>>
    %c4_20 = arith.constant 4 : index
    %180 = memref.load %arg4[%c4_20] : memref<16xf32, #tpu.memory_space<smem>>
    %c5_21 = arith.constant 5 : index
    %181 = memref.load %arg4[%c5_21] : memref<16xf32, #tpu.memory_space<smem>>
    %c6_22 = arith.constant 6 : index
    %182 = memref.load %arg4[%c6_22] : memref<16xf32, #tpu.memory_space<smem>>
    %c7_23 = arith.constant 7 : index
    %183 = memref.load %arg4[%c7_23] : memref<16xf32, #tpu.memory_space<smem>>
    %c8_24 = arith.constant 8 : index
    %184 = memref.load %arg4[%c8_24] : memref<16xf32, #tpu.memory_space<smem>>
    %c9_25 = arith.constant 9 : index
    %185 = memref.load %arg4[%c9_25] : memref<16xf32, #tpu.memory_space<smem>>
    %c10_26 = arith.constant 10 : index
    %186 = memref.load %arg4[%c10_26] : memref<16xf32, #tpu.memory_space<smem>>
    %c11_27 = arith.constant 11 : index
    %187 = memref.load %arg4[%c11_27] : memref<16xf32, #tpu.memory_space<smem>>
    %c12_28 = arith.constant 12 : index
    %188 = memref.load %arg4[%c12_28] : memref<16xf32, #tpu.memory_space<smem>>
    %c13_29 = arith.constant 13 : index
    %189 = memref.load %arg4[%c13_29] : memref<16xf32, #tpu.memory_space<smem>>
    %c14_30 = arith.constant 14 : index
    %190 = memref.load %arg4[%c14_30] : memref<16xf32, #tpu.memory_space<smem>>
    %c15_31 = arith.constant 15 : index
    %191 = memref.load %arg4[%c15_31] : memref<16xf32, #tpu.memory_space<smem>>
    %c0_32 = arith.constant 0 : index
    %192 = memref.load %arg5[%c0_32] : memref<1xf32, #tpu.memory_space<smem>>
    %c0_i32 = arith.constant 0 : i32
    %c16_i32 = arith.constant 16 : i32
    %193 = arith.muli %c0_i32, %c16_i32 : i32
    %194 = tpu.assume_multiple %193, 16 : i32
    %c0_33 = arith.constant 0 : index
    %195 = arith.index_cast %194 : i32 to index
    %c0_34 = arith.constant 0 : index
    %196 = vector.load %arg1[%c0_33, %195, %c0_34] : memref<10x16x128xf32, #tpu.memory_space<vmem>>, vector<1x16x128xf32>
    %197 = vector.shape_cast %196 : vector<1x16x128xf32> to vector<16x128xf32>
    %c1_35 = arith.constant 1 : index
    %198 = arith.index_cast %194 : i32 to index
    %c0_36 = arith.constant 0 : index
    %199 = vector.load %arg1[%c1_35, %198, %c0_36] : memref<10x16x128xf32, #tpu.memory_space<vmem>>, vector<1x16x128xf32>
    %200 = vector.shape_cast %199 : vector<1x16x128xf32> to vector<16x128xf32>
    %c2_37 = arith.constant 2 : index
    %201 = arith.index_cast %194 : i32 to index
    %c0_38 = arith.constant 0 : index
    %202 = vector.load %arg1[%c2_37, %201, %c0_38] : memref<10x16x128xf32, #tpu.memory_space<vmem>>, vector<1x16x128xf32>
    %203 = vector.shape_cast %202 : vector<1x16x128xf32> to vector<16x128xf32>
    %c3_39 = arith.constant 3 : index
    %204 = arith.index_cast %194 : i32 to index
    %c0_40 = arith.constant 0 : index
    %205 = vector.load %arg1[%c3_39, %204, %c0_40] : memref<10x16x128xf32, #tpu.memory_space<vmem>>, vector<1x16x128xf32>
    %206 = vector.shape_cast %205 : vector<1x16x128xf32> to vector<16x128xf32>
    %c4_41 = arith.constant 4 : index
    %207 = arith.index_cast %194 : i32 to index
    %c0_42 = arith.constant 0 : index
    %208 = vector.load %arg1[%c4_41, %207, %c0_42] : memref<10x16x128xf32, #tpu.memory_space<vmem>>, vector<1x16x128xf32>
    %209 = vector.shape_cast %208 : vector<1x16x128xf32> to vector<16x128xf32>
    %c5_43 = arith.constant 5 : index
    %210 = arith.index_cast %194 : i32 to index
    %c0_44 = arith.constant 0 : index
    %211 = vector.load %arg1[%c5_43, %210, %c0_44] : memref<10x16x128xf32, #tpu.memory_space<vmem>>, vector<1x16x128xf32>
    %212 = vector.shape_cast %211 : vector<1x16x128xf32> to vector<16x128xf32>
    %c6_45 = arith.constant 6 : index
    %213 = arith.index_cast %194 : i32 to index
    %c0_46 = arith.constant 0 : index
    %214 = vector.load %arg1[%c6_45, %213, %c0_46] : memref<10x16x128xf32, #tpu.memory_space<vmem>>, vector<1x16x128xf32>
    %215 = vector.shape_cast %214 : vector<1x16x128xf32> to vector<16x128xf32>
    %c7_47 = arith.constant 7 : index
    %216 = arith.index_cast %194 : i32 to index
    %c0_48 = arith.constant 0 : index
    %217 = vector.load %arg1[%c7_47, %216, %c0_48] : memref<10x16x128xf32, #tpu.memory_space<vmem>>, vector<1x16x128xf32>
    %218 = vector.shape_cast %217 : vector<1x16x128xf32> to vector<16x128xf32>
    %c8_49 = arith.constant 8 : index
    %219 = arith.index_cast %194 : i32 to index
    %c0_50 = arith.constant 0 : index
    %220 = vector.load %arg1[%c8_49, %219, %c0_50] : memref<10x16x128xf32, #tpu.memory_space<vmem>>, vector<1x16x128xf32>
    %221 = vector.shape_cast %220 : vector<1x16x128xf32> to vector<16x128xf32>
    %c9_51 = arith.constant 9 : index
    %222 = arith.index_cast %194 : i32 to index
    %c0_52 = arith.constant 0 : index
    %223 = vector.load %arg1[%c9_51, %222, %c0_52] : memref<10x16x128xf32, #tpu.memory_space<vmem>>, vector<1x16x128xf32>
    %224 = vector.shape_cast %223 : vector<1x16x128xf32> to vector<16x128xf32>
    %225 = vector.broadcast %0 : f32 to vector<16x128xf32>
    %226 = arith.mulf %197, %225 : vector<16x128xf32>
    %227 = vector.broadcast %16 : f32 to vector<16x128xf32>
    %228 = arith.mulf %200, %227 : vector<16x128xf32>
    %229 = arith.addf %226, %228 : vector<16x128xf32>
    %230 = vector.broadcast %32 : f32 to vector<16x128xf32>
    %231 = arith.mulf %203, %230 : vector<16x128xf32>
    %232 = arith.addf %229, %231 : vector<16x128xf32>
    %233 = vector.broadcast %48 : f32 to vector<16x128xf32>
    %234 = arith.mulf %206, %233 : vector<16x128xf32>
    %235 = arith.addf %232, %234 : vector<16x128xf32>
    %236 = vector.broadcast %64 : f32 to vector<16x128xf32>
    %237 = arith.mulf %209, %236 : vector<16x128xf32>
    %238 = arith.addf %235, %237 : vector<16x128xf32>
    %239 = vector.broadcast %80 : f32 to vector<16x128xf32>
    %240 = arith.mulf %212, %239 : vector<16x128xf32>
    %241 = arith.addf %238, %240 : vector<16x128xf32>
    %242 = vector.broadcast %96 : f32 to vector<16x128xf32>
    %243 = arith.mulf %215, %242 : vector<16x128xf32>
    %244 = arith.addf %241, %243 : vector<16x128xf32>
    %245 = vector.broadcast %112 : f32 to vector<16x128xf32>
    %246 = arith.mulf %218, %245 : vector<16x128xf32>
    %247 = arith.addf %244, %246 : vector<16x128xf32>
    %248 = vector.broadcast %128 : f32 to vector<16x128xf32>
    %249 = arith.mulf %221, %248 : vector<16x128xf32>
    %250 = arith.addf %247, %249 : vector<16x128xf32>
    %251 = vector.broadcast %144 : f32 to vector<16x128xf32>
    %252 = arith.mulf %224, %251 : vector<16x128xf32>
    %253 = arith.addf %250, %252 : vector<16x128xf32>
    %254 = vector.broadcast %160 : f32 to vector<16x128xf32>
    %255 = arith.addf %253, %254 : vector<16x128xf32>
    %cst = arith.constant 0.000000e+00 : f32
    %256 = vector.broadcast %cst : f32 to vector<16x128xf32>
    %257 = arith.maximumf %255, %256 : vector<16x128xf32>
    %258 = vector.broadcast %176 : f32 to vector<16x128xf32>
    %259 = arith.mulf %257, %258 : vector<16x128xf32>
    %260 = vector.broadcast %1 : f32 to vector<16x128xf32>
    %261 = arith.mulf %197, %260 : vector<16x128xf32>
    %262 = vector.broadcast %17 : f32 to vector<16x128xf32>
    %263 = arith.mulf %200, %262 : vector<16x128xf32>
    %264 = arith.addf %261, %263 : vector<16x128xf32>
    %265 = vector.broadcast %33 : f32 to vector<16x128xf32>
    %266 = arith.mulf %203, %265 : vector<16x128xf32>
    %267 = arith.addf %264, %266 : vector<16x128xf32>
    %268 = vector.broadcast %49 : f32 to vector<16x128xf32>
    %269 = arith.mulf %206, %268 : vector<16x128xf32>
    %270 = arith.addf %267, %269 : vector<16x128xf32>
    %271 = vector.broadcast %65 : f32 to vector<16x128xf32>
    %272 = arith.mulf %209, %271 : vector<16x128xf32>
    %273 = arith.addf %270, %272 : vector<16x128xf32>
    %274 = vector.broadcast %81 : f32 to vector<16x128xf32>
    %275 = arith.mulf %212, %274 : vector<16x128xf32>
    %276 = arith.addf %273, %275 : vector<16x128xf32>
    %277 = vector.broadcast %97 : f32 to vector<16x128xf32>
    %278 = arith.mulf %215, %277 : vector<16x128xf32>
    %279 = arith.addf %276, %278 : vector<16x128xf32>
    %280 = vector.broadcast %113 : f32 to vector<16x128xf32>
    %281 = arith.mulf %218, %280 : vector<16x128xf32>
    %282 = arith.addf %279, %281 : vector<16x128xf32>
    %283 = vector.broadcast %129 : f32 to vector<16x128xf32>
    %284 = arith.mulf %221, %283 : vector<16x128xf32>
    %285 = arith.addf %282, %284 : vector<16x128xf32>
    %286 = vector.broadcast %145 : f32 to vector<16x128xf32>
    %287 = arith.mulf %224, %286 : vector<16x128xf32>
    %288 = arith.addf %285, %287 : vector<16x128xf32>
    %289 = vector.broadcast %161 : f32 to vector<16x128xf32>
    %290 = arith.addf %288, %289 : vector<16x128xf32>
    %cst_53 = arith.constant 0.000000e+00 : f32
    %291 = vector.broadcast %cst_53 : f32 to vector<16x128xf32>
    %292 = arith.maximumf %290, %291 : vector<16x128xf32>
    %293 = vector.broadcast %177 : f32 to vector<16x128xf32>
    %294 = arith.mulf %292, %293 : vector<16x128xf32>
    %295 = arith.addf %259, %294 : vector<16x128xf32>
    %296 = vector.broadcast %2 : f32 to vector<16x128xf32>
    %297 = arith.mulf %197, %296 : vector<16x128xf32>
    %298 = vector.broadcast %18 : f32 to vector<16x128xf32>
    %299 = arith.mulf %200, %298 : vector<16x128xf32>
    %300 = arith.addf %297, %299 : vector<16x128xf32>
    %301 = vector.broadcast %34 : f32 to vector<16x128xf32>
    %302 = arith.mulf %203, %301 : vector<16x128xf32>
    %303 = arith.addf %300, %302 : vector<16x128xf32>
    %304 = vector.broadcast %50 : f32 to vector<16x128xf32>
    %305 = arith.mulf %206, %304 : vector<16x128xf32>
    %306 = arith.addf %303, %305 : vector<16x128xf32>
    %307 = vector.broadcast %66 : f32 to vector<16x128xf32>
    %308 = arith.mulf %209, %307 : vector<16x128xf32>
    %309 = arith.addf %306, %308 : vector<16x128xf32>
    %310 = vector.broadcast %82 : f32 to vector<16x128xf32>
    %311 = arith.mulf %212, %310 : vector<16x128xf32>
    %312 = arith.addf %309, %311 : vector<16x128xf32>
    %313 = vector.broadcast %98 : f32 to vector<16x128xf32>
    %314 = arith.mulf %215, %313 : vector<16x128xf32>
    %315 = arith.addf %312, %314 : vector<16x128xf32>
    %316 = vector.broadcast %114 : f32 to vector<16x128xf32>
    %317 = arith.mulf %218, %316 : vector<16x128xf32>
    %318 = arith.addf %315, %317 : vector<16x128xf32>
    %319 = vector.broadcast %130 : f32 to vector<16x128xf32>
    %320 = arith.mulf %221, %319 : vector<16x128xf32>
    %321 = arith.addf %318, %320 : vector<16x128xf32>
    %322 = vector.broadcast %146 : f32 to vector<16x128xf32>
    %323 = arith.mulf %224, %322 : vector<16x128xf32>
    %324 = arith.addf %321, %323 : vector<16x128xf32>
    %325 = vector.broadcast %162 : f32 to vector<16x128xf32>
    %326 = arith.addf %324, %325 : vector<16x128xf32>
    %cst_54 = arith.constant 0.000000e+00 : f32
    %327 = vector.broadcast %cst_54 : f32 to vector<16x128xf32>
    %328 = arith.maximumf %326, %327 : vector<16x128xf32>
    %329 = vector.broadcast %178 : f32 to vector<16x128xf32>
    %330 = arith.mulf %328, %329 : vector<16x128xf32>
    %331 = arith.addf %295, %330 : vector<16x128xf32>
    %332 = vector.broadcast %3 : f32 to vector<16x128xf32>
    %333 = arith.mulf %197, %332 : vector<16x128xf32>
    %334 = vector.broadcast %19 : f32 to vector<16x128xf32>
    %335 = arith.mulf %200, %334 : vector<16x128xf32>
    %336 = arith.addf %333, %335 : vector<16x128xf32>
    %337 = vector.broadcast %35 : f32 to vector<16x128xf32>
    %338 = arith.mulf %203, %337 : vector<16x128xf32>
    %339 = arith.addf %336, %338 : vector<16x128xf32>
    %340 = vector.broadcast %51 : f32 to vector<16x128xf32>
    %341 = arith.mulf %206, %340 : vector<16x128xf32>
    %342 = arith.addf %339, %341 : vector<16x128xf32>
    %343 = vector.broadcast %67 : f32 to vector<16x128xf32>
    %344 = arith.mulf %209, %343 : vector<16x128xf32>
    %345 = arith.addf %342, %344 : vector<16x128xf32>
    %346 = vector.broadcast %83 : f32 to vector<16x128xf32>
    %347 = arith.mulf %212, %346 : vector<16x128xf32>
    %348 = arith.addf %345, %347 : vector<16x128xf32>
    %349 = vector.broadcast %99 : f32 to vector<16x128xf32>
    %350 = arith.mulf %215, %349 : vector<16x128xf32>
    %351 = arith.addf %348, %350 : vector<16x128xf32>
    %352 = vector.broadcast %115 : f32 to vector<16x128xf32>
    %353 = arith.mulf %218, %352 : vector<16x128xf32>
    %354 = arith.addf %351, %353 : vector<16x128xf32>
    %355 = vector.broadcast %131 : f32 to vector<16x128xf32>
    %356 = arith.mulf %221, %355 : vector<16x128xf32>
    %357 = arith.addf %354, %356 : vector<16x128xf32>
    %358 = vector.broadcast %147 : f32 to vector<16x128xf32>
    %359 = arith.mulf %224, %358 : vector<16x128xf32>
    %360 = arith.addf %357, %359 : vector<16x128xf32>
    %361 = vector.broadcast %163 : f32 to vector<16x128xf32>
    %362 = arith.addf %360, %361 : vector<16x128xf32>
    %cst_55 = arith.constant 0.000000e+00 : f32
    %363 = vector.broadcast %cst_55 : f32 to vector<16x128xf32>
    %364 = arith.maximumf %362, %363 : vector<16x128xf32>
    %365 = vector.broadcast %179 : f32 to vector<16x128xf32>
    %366 = arith.mulf %364, %365 : vector<16x128xf32>
    %367 = arith.addf %331, %366 : vector<16x128xf32>
    %368 = vector.broadcast %4 : f32 to vector<16x128xf32>
    %369 = arith.mulf %197, %368 : vector<16x128xf32>
    %370 = vector.broadcast %20 : f32 to vector<16x128xf32>
    %371 = arith.mulf %200, %370 : vector<16x128xf32>
    %372 = arith.addf %369, %371 : vector<16x128xf32>
    %373 = vector.broadcast %36 : f32 to vector<16x128xf32>
    %374 = arith.mulf %203, %373 : vector<16x128xf32>
    %375 = arith.addf %372, %374 : vector<16x128xf32>
    %376 = vector.broadcast %52 : f32 to vector<16x128xf32>
    %377 = arith.mulf %206, %376 : vector<16x128xf32>
    %378 = arith.addf %375, %377 : vector<16x128xf32>
    %379 = vector.broadcast %68 : f32 to vector<16x128xf32>
    %380 = arith.mulf %209, %379 : vector<16x128xf32>
    %381 = arith.addf %378, %380 : vector<16x128xf32>
    %382 = vector.broadcast %84 : f32 to vector<16x128xf32>
    %383 = arith.mulf %212, %382 : vector<16x128xf32>
    %384 = arith.addf %381, %383 : vector<16x128xf32>
    %385 = vector.broadcast %100 : f32 to vector<16x128xf32>
    %386 = arith.mulf %215, %385 : vector<16x128xf32>
    %387 = arith.addf %384, %386 : vector<16x128xf32>
    %388 = vector.broadcast %116 : f32 to vector<16x128xf32>
    %389 = arith.mulf %218, %388 : vector<16x128xf32>
    %390 = arith.addf %387, %389 : vector<16x128xf32>
    %391 = vector.broadcast %132 : f32 to vector<16x128xf32>
    %392 = arith.mulf %221, %391 : vector<16x128xf32>
    %393 = arith.addf %390, %392 : vector<16x128xf32>
    %394 = vector.broadcast %148 : f32 to vector<16x128xf32>
    %395 = arith.mulf %224, %394 : vector<16x128xf32>
    %396 = arith.addf %393, %395 : vector<16x128xf32>
    %397 = vector.broadcast %164 : f32 to vector<16x128xf32>
    %398 = arith.addf %396, %397 : vector<16x128xf32>
    %cst_56 = arith.constant 0.000000e+00 : f32
    %399 = vector.broadcast %cst_56 : f32 to vector<16x128xf32>
    %400 = arith.maximumf %398, %399 : vector<16x128xf32>
    %401 = vector.broadcast %180 : f32 to vector<16x128xf32>
    %402 = arith.mulf %400, %401 : vector<16x128xf32>
    %403 = arith.addf %367, %402 : vector<16x128xf32>
    %404 = vector.broadcast %5 : f32 to vector<16x128xf32>
    %405 = arith.mulf %197, %404 : vector<16x128xf32>
    %406 = vector.broadcast %21 : f32 to vector<16x128xf32>
    %407 = arith.mulf %200, %406 : vector<16x128xf32>
    %408 = arith.addf %405, %407 : vector<16x128xf32>
    %409 = vector.broadcast %37 : f32 to vector<16x128xf32>
    %410 = arith.mulf %203, %409 : vector<16x128xf32>
    %411 = arith.addf %408, %410 : vector<16x128xf32>
    %412 = vector.broadcast %53 : f32 to vector<16x128xf32>
    %413 = arith.mulf %206, %412 : vector<16x128xf32>
    %414 = arith.addf %411, %413 : vector<16x128xf32>
    %415 = vector.broadcast %69 : f32 to vector<16x128xf32>
    %416 = arith.mulf %209, %415 : vector<16x128xf32>
    %417 = arith.addf %414, %416 : vector<16x128xf32>
    %418 = vector.broadcast %85 : f32 to vector<16x128xf32>
    %419 = arith.mulf %212, %418 : vector<16x128xf32>
    %420 = arith.addf %417, %419 : vector<16x128xf32>
    %421 = vector.broadcast %101 : f32 to vector<16x128xf32>
    %422 = arith.mulf %215, %421 : vector<16x128xf32>
    %423 = arith.addf %420, %422 : vector<16x128xf32>
    %424 = vector.broadcast %117 : f32 to vector<16x128xf32>
    %425 = arith.mulf %218, %424 : vector<16x128xf32>
    %426 = arith.addf %423, %425 : vector<16x128xf32>
    %427 = vector.broadcast %133 : f32 to vector<16x128xf32>
    %428 = arith.mulf %221, %427 : vector<16x128xf32>
    %429 = arith.addf %426, %428 : vector<16x128xf32>
    %430 = vector.broadcast %149 : f32 to vector<16x128xf32>
    %431 = arith.mulf %224, %430 : vector<16x128xf32>
    %432 = arith.addf %429, %431 : vector<16x128xf32>
    %433 = vector.broadcast %165 : f32 to vector<16x128xf32>
    %434 = arith.addf %432, %433 : vector<16x128xf32>
    %cst_57 = arith.constant 0.000000e+00 : f32
    %435 = vector.broadcast %cst_57 : f32 to vector<16x128xf32>
    %436 = arith.maximumf %434, %435 : vector<16x128xf32>
    %437 = vector.broadcast %181 : f32 to vector<16x128xf32>
    %438 = arith.mulf %436, %437 : vector<16x128xf32>
    %439 = arith.addf %403, %438 : vector<16x128xf32>
    %440 = vector.broadcast %6 : f32 to vector<16x128xf32>
    %441 = arith.mulf %197, %440 : vector<16x128xf32>
    %442 = vector.broadcast %22 : f32 to vector<16x128xf32>
    %443 = arith.mulf %200, %442 : vector<16x128xf32>
    %444 = arith.addf %441, %443 : vector<16x128xf32>
    %445 = vector.broadcast %38 : f32 to vector<16x128xf32>
    %446 = arith.mulf %203, %445 : vector<16x128xf32>
    %447 = arith.addf %444, %446 : vector<16x128xf32>
    %448 = vector.broadcast %54 : f32 to vector<16x128xf32>
    %449 = arith.mulf %206, %448 : vector<16x128xf32>
    %450 = arith.addf %447, %449 : vector<16x128xf32>
    %451 = vector.broadcast %70 : f32 to vector<16x128xf32>
    %452 = arith.mulf %209, %451 : vector<16x128xf32>
    %453 = arith.addf %450, %452 : vector<16x128xf32>
    %454 = vector.broadcast %86 : f32 to vector<16x128xf32>
    %455 = arith.mulf %212, %454 : vector<16x128xf32>
    %456 = arith.addf %453, %455 : vector<16x128xf32>
    %457 = vector.broadcast %102 : f32 to vector<16x128xf32>
    %458 = arith.mulf %215, %457 : vector<16x128xf32>
    %459 = arith.addf %456, %458 : vector<16x128xf32>
    %460 = vector.broadcast %118 : f32 to vector<16x128xf32>
    %461 = arith.mulf %218, %460 : vector<16x128xf32>
    %462 = arith.addf %459, %461 : vector<16x128xf32>
    %463 = vector.broadcast %134 : f32 to vector<16x128xf32>
    %464 = arith.mulf %221, %463 : vector<16x128xf32>
    %465 = arith.addf %462, %464 : vector<16x128xf32>
    %466 = vector.broadcast %150 : f32 to vector<16x128xf32>
    %467 = arith.mulf %224, %466 : vector<16x128xf32>
    %468 = arith.addf %465, %467 : vector<16x128xf32>
    %469 = vector.broadcast %166 : f32 to vector<16x128xf32>
    %470 = arith.addf %468, %469 : vector<16x128xf32>
    %cst_58 = arith.constant 0.000000e+00 : f32
    %471 = vector.broadcast %cst_58 : f32 to vector<16x128xf32>
    %472 = arith.maximumf %470, %471 : vector<16x128xf32>
    %473 = vector.broadcast %182 : f32 to vector<16x128xf32>
    %474 = arith.mulf %472, %473 : vector<16x128xf32>
    %475 = arith.addf %439, %474 : vector<16x128xf32>
    %476 = vector.broadcast %7 : f32 to vector<16x128xf32>
    %477 = arith.mulf %197, %476 : vector<16x128xf32>
    %478 = vector.broadcast %23 : f32 to vector<16x128xf32>
    %479 = arith.mulf %200, %478 : vector<16x128xf32>
    %480 = arith.addf %477, %479 : vector<16x128xf32>
    %481 = vector.broadcast %39 : f32 to vector<16x128xf32>
    %482 = arith.mulf %203, %481 : vector<16x128xf32>
    %483 = arith.addf %480, %482 : vector<16x128xf32>
    %484 = vector.broadcast %55 : f32 to vector<16x128xf32>
    %485 = arith.mulf %206, %484 : vector<16x128xf32>
    %486 = arith.addf %483, %485 : vector<16x128xf32>
    %487 = vector.broadcast %71 : f32 to vector<16x128xf32>
    %488 = arith.mulf %209, %487 : vector<16x128xf32>
    %489 = arith.addf %486, %488 : vector<16x128xf32>
    %490 = vector.broadcast %87 : f32 to vector<16x128xf32>
    %491 = arith.mulf %212, %490 : vector<16x128xf32>
    %492 = arith.addf %489, %491 : vector<16x128xf32>
    %493 = vector.broadcast %103 : f32 to vector<16x128xf32>
    %494 = arith.mulf %215, %493 : vector<16x128xf32>
    %495 = arith.addf %492, %494 : vector<16x128xf32>
    %496 = vector.broadcast %119 : f32 to vector<16x128xf32>
    %497 = arith.mulf %218, %496 : vector<16x128xf32>
    %498 = arith.addf %495, %497 : vector<16x128xf32>
    %499 = vector.broadcast %135 : f32 to vector<16x128xf32>
    %500 = arith.mulf %221, %499 : vector<16x128xf32>
    %501 = arith.addf %498, %500 : vector<16x128xf32>
    %502 = vector.broadcast %151 : f32 to vector<16x128xf32>
    %503 = arith.mulf %224, %502 : vector<16x128xf32>
    %504 = arith.addf %501, %503 : vector<16x128xf32>
    %505 = vector.broadcast %167 : f32 to vector<16x128xf32>
    %506 = arith.addf %504, %505 : vector<16x128xf32>
    %cst_59 = arith.constant 0.000000e+00 : f32
    %507 = vector.broadcast %cst_59 : f32 to vector<16x128xf32>
    %508 = arith.maximumf %506, %507 : vector<16x128xf32>
    %509 = vector.broadcast %183 : f32 to vector<16x128xf32>
    %510 = arith.mulf %508, %509 : vector<16x128xf32>
    %511 = arith.addf %475, %510 : vector<16x128xf32>
    %512 = vector.broadcast %8 : f32 to vector<16x128xf32>
    %513 = arith.mulf %197, %512 : vector<16x128xf32>
    %514 = vector.broadcast %24 : f32 to vector<16x128xf32>
    %515 = arith.mulf %200, %514 : vector<16x128xf32>
    %516 = arith.addf %513, %515 : vector<16x128xf32>
    %517 = vector.broadcast %40 : f32 to vector<16x128xf32>
    %518 = arith.mulf %203, %517 : vector<16x128xf32>
    %519 = arith.addf %516, %518 : vector<16x128xf32>
    %520 = vector.broadcast %56 : f32 to vector<16x128xf32>
    %521 = arith.mulf %206, %520 : vector<16x128xf32>
    %522 = arith.addf %519, %521 : vector<16x128xf32>
    %523 = vector.broadcast %72 : f32 to vector<16x128xf32>
    %524 = arith.mulf %209, %523 : vector<16x128xf32>
    %525 = arith.addf %522, %524 : vector<16x128xf32>
    %526 = vector.broadcast %88 : f32 to vector<16x128xf32>
    %527 = arith.mulf %212, %526 : vector<16x128xf32>
    %528 = arith.addf %525, %527 : vector<16x128xf32>
    %529 = vector.broadcast %104 : f32 to vector<16x128xf32>
    %530 = arith.mulf %215, %529 : vector<16x128xf32>
    %531 = arith.addf %528, %530 : vector<16x128xf32>
    %532 = vector.broadcast %120 : f32 to vector<16x128xf32>
    %533 = arith.mulf %218, %532 : vector<16x128xf32>
    %534 = arith.addf %531, %533 : vector<16x128xf32>
    %535 = vector.broadcast %136 : f32 to vector<16x128xf32>
    %536 = arith.mulf %221, %535 : vector<16x128xf32>
    %537 = arith.addf %534, %536 : vector<16x128xf32>
    %538 = vector.broadcast %152 : f32 to vector<16x128xf32>
    %539 = arith.mulf %224, %538 : vector<16x128xf32>
    %540 = arith.addf %537, %539 : vector<16x128xf32>
    %541 = vector.broadcast %168 : f32 to vector<16x128xf32>
    %542 = arith.addf %540, %541 : vector<16x128xf32>
    %cst_60 = arith.constant 0.000000e+00 : f32
    %543 = vector.broadcast %cst_60 : f32 to vector<16x128xf32>
    %544 = arith.maximumf %542, %543 : vector<16x128xf32>
    %545 = vector.broadcast %184 : f32 to vector<16x128xf32>
    %546 = arith.mulf %544, %545 : vector<16x128xf32>
    %547 = arith.addf %511, %546 : vector<16x128xf32>
    %548 = vector.broadcast %9 : f32 to vector<16x128xf32>
    %549 = arith.mulf %197, %548 : vector<16x128xf32>
    %550 = vector.broadcast %25 : f32 to vector<16x128xf32>
    %551 = arith.mulf %200, %550 : vector<16x128xf32>
    %552 = arith.addf %549, %551 : vector<16x128xf32>
    %553 = vector.broadcast %41 : f32 to vector<16x128xf32>
    %554 = arith.mulf %203, %553 : vector<16x128xf32>
    %555 = arith.addf %552, %554 : vector<16x128xf32>
    %556 = vector.broadcast %57 : f32 to vector<16x128xf32>
    %557 = arith.mulf %206, %556 : vector<16x128xf32>
    %558 = arith.addf %555, %557 : vector<16x128xf32>
    %559 = vector.broadcast %73 : f32 to vector<16x128xf32>
    %560 = arith.mulf %209, %559 : vector<16x128xf32>
    %561 = arith.addf %558, %560 : vector<16x128xf32>
    %562 = vector.broadcast %89 : f32 to vector<16x128xf32>
    %563 = arith.mulf %212, %562 : vector<16x128xf32>
    %564 = arith.addf %561, %563 : vector<16x128xf32>
    %565 = vector.broadcast %105 : f32 to vector<16x128xf32>
    %566 = arith.mulf %215, %565 : vector<16x128xf32>
    %567 = arith.addf %564, %566 : vector<16x128xf32>
    %568 = vector.broadcast %121 : f32 to vector<16x128xf32>
    %569 = arith.mulf %218, %568 : vector<16x128xf32>
    %570 = arith.addf %567, %569 : vector<16x128xf32>
    %571 = vector.broadcast %137 : f32 to vector<16x128xf32>
    %572 = arith.mulf %221, %571 : vector<16x128xf32>
    %573 = arith.addf %570, %572 : vector<16x128xf32>
    %574 = vector.broadcast %153 : f32 to vector<16x128xf32>
    %575 = arith.mulf %224, %574 : vector<16x128xf32>
    %576 = arith.addf %573, %575 : vector<16x128xf32>
    %577 = vector.broadcast %169 : f32 to vector<16x128xf32>
    %578 = arith.addf %576, %577 : vector<16x128xf32>
    %cst_61 = arith.constant 0.000000e+00 : f32
    %579 = vector.broadcast %cst_61 : f32 to vector<16x128xf32>
    %580 = arith.maximumf %578, %579 : vector<16x128xf32>
    %581 = vector.broadcast %185 : f32 to vector<16x128xf32>
    %582 = arith.mulf %580, %581 : vector<16x128xf32>
    %583 = arith.addf %547, %582 : vector<16x128xf32>
    %584 = vector.broadcast %10 : f32 to vector<16x128xf32>
    %585 = arith.mulf %197, %584 : vector<16x128xf32>
    %586 = vector.broadcast %26 : f32 to vector<16x128xf32>
    %587 = arith.mulf %200, %586 : vector<16x128xf32>
    %588 = arith.addf %585, %587 : vector<16x128xf32>
    %589 = vector.broadcast %42 : f32 to vector<16x128xf32>
    %590 = arith.mulf %203, %589 : vector<16x128xf32>
    %591 = arith.addf %588, %590 : vector<16x128xf32>
    %592 = vector.broadcast %58 : f32 to vector<16x128xf32>
    %593 = arith.mulf %206, %592 : vector<16x128xf32>
    %594 = arith.addf %591, %593 : vector<16x128xf32>
    %595 = vector.broadcast %74 : f32 to vector<16x128xf32>
    %596 = arith.mulf %209, %595 : vector<16x128xf32>
    %597 = arith.addf %594, %596 : vector<16x128xf32>
    %598 = vector.broadcast %90 : f32 to vector<16x128xf32>
    %599 = arith.mulf %212, %598 : vector<16x128xf32>
    %600 = arith.addf %597, %599 : vector<16x128xf32>
    %601 = vector.broadcast %106 : f32 to vector<16x128xf32>
    %602 = arith.mulf %215, %601 : vector<16x128xf32>
    %603 = arith.addf %600, %602 : vector<16x128xf32>
    %604 = vector.broadcast %122 : f32 to vector<16x128xf32>
    %605 = arith.mulf %218, %604 : vector<16x128xf32>
    %606 = arith.addf %603, %605 : vector<16x128xf32>
    %607 = vector.broadcast %138 : f32 to vector<16x128xf32>
    %608 = arith.mulf %221, %607 : vector<16x128xf32>
    %609 = arith.addf %606, %608 : vector<16x128xf32>
    %610 = vector.broadcast %154 : f32 to vector<16x128xf32>
    %611 = arith.mulf %224, %610 : vector<16x128xf32>
    %612 = arith.addf %609, %611 : vector<16x128xf32>
    %613 = vector.broadcast %170 : f32 to vector<16x128xf32>
    %614 = arith.addf %612, %613 : vector<16x128xf32>
    %cst_62 = arith.constant 0.000000e+00 : f32
    %615 = vector.broadcast %cst_62 : f32 to vector<16x128xf32>
    %616 = arith.maximumf %614, %615 : vector<16x128xf32>
    %617 = vector.broadcast %186 : f32 to vector<16x128xf32>
    %618 = arith.mulf %616, %617 : vector<16x128xf32>
    %619 = arith.addf %583, %618 : vector<16x128xf32>
    %620 = vector.broadcast %11 : f32 to vector<16x128xf32>
    %621 = arith.mulf %197, %620 : vector<16x128xf32>
    %622 = vector.broadcast %27 : f32 to vector<16x128xf32>
    %623 = arith.mulf %200, %622 : vector<16x128xf32>
    %624 = arith.addf %621, %623 : vector<16x128xf32>
    %625 = vector.broadcast %43 : f32 to vector<16x128xf32>
    %626 = arith.mulf %203, %625 : vector<16x128xf32>
    %627 = arith.addf %624, %626 : vector<16x128xf32>
    %628 = vector.broadcast %59 : f32 to vector<16x128xf32>
    %629 = arith.mulf %206, %628 : vector<16x128xf32>
    %630 = arith.addf %627, %629 : vector<16x128xf32>
    %631 = vector.broadcast %75 : f32 to vector<16x128xf32>
    %632 = arith.mulf %209, %631 : vector<16x128xf32>
    %633 = arith.addf %630, %632 : vector<16x128xf32>
    %634 = vector.broadcast %91 : f32 to vector<16x128xf32>
    %635 = arith.mulf %212, %634 : vector<16x128xf32>
    %636 = arith.addf %633, %635 : vector<16x128xf32>
    %637 = vector.broadcast %107 : f32 to vector<16x128xf32>
    %638 = arith.mulf %215, %637 : vector<16x128xf32>
    %639 = arith.addf %636, %638 : vector<16x128xf32>
    %640 = vector.broadcast %123 : f32 to vector<16x128xf32>
    %641 = arith.mulf %218, %640 : vector<16x128xf32>
    %642 = arith.addf %639, %641 : vector<16x128xf32>
    %643 = vector.broadcast %139 : f32 to vector<16x128xf32>
    %644 = arith.mulf %221, %643 : vector<16x128xf32>
    %645 = arith.addf %642, %644 : vector<16x128xf32>
    %646 = vector.broadcast %155 : f32 to vector<16x128xf32>
    %647 = arith.mulf %224, %646 : vector<16x128xf32>
    %648 = arith.addf %645, %647 : vector<16x128xf32>
    %649 = vector.broadcast %171 : f32 to vector<16x128xf32>
    %650 = arith.addf %648, %649 : vector<16x128xf32>
    %cst_63 = arith.constant 0.000000e+00 : f32
    %651 = vector.broadcast %cst_63 : f32 to vector<16x128xf32>
    %652 = arith.maximumf %650, %651 : vector<16x128xf32>
    %653 = vector.broadcast %187 : f32 to vector<16x128xf32>
    %654 = arith.mulf %652, %653 : vector<16x128xf32>
    %655 = arith.addf %619, %654 : vector<16x128xf32>
    %656 = vector.broadcast %12 : f32 to vector<16x128xf32>
    %657 = arith.mulf %197, %656 : vector<16x128xf32>
    %658 = vector.broadcast %28 : f32 to vector<16x128xf32>
    %659 = arith.mulf %200, %658 : vector<16x128xf32>
    %660 = arith.addf %657, %659 : vector<16x128xf32>
    %661 = vector.broadcast %44 : f32 to vector<16x128xf32>
    %662 = arith.mulf %203, %661 : vector<16x128xf32>
    %663 = arith.addf %660, %662 : vector<16x128xf32>
    %664 = vector.broadcast %60 : f32 to vector<16x128xf32>
    %665 = arith.mulf %206, %664 : vector<16x128xf32>
    %666 = arith.addf %663, %665 : vector<16x128xf32>
    %667 = vector.broadcast %76 : f32 to vector<16x128xf32>
    %668 = arith.mulf %209, %667 : vector<16x128xf32>
    %669 = arith.addf %666, %668 : vector<16x128xf32>
    %670 = vector.broadcast %92 : f32 to vector<16x128xf32>
    %671 = arith.mulf %212, %670 : vector<16x128xf32>
    %672 = arith.addf %669, %671 : vector<16x128xf32>
    %673 = vector.broadcast %108 : f32 to vector<16x128xf32>
    %674 = arith.mulf %215, %673 : vector<16x128xf32>
    %675 = arith.addf %672, %674 : vector<16x128xf32>
    %676 = vector.broadcast %124 : f32 to vector<16x128xf32>
    %677 = arith.mulf %218, %676 : vector<16x128xf32>
    %678 = arith.addf %675, %677 : vector<16x128xf32>
    %679 = vector.broadcast %140 : f32 to vector<16x128xf32>
    %680 = arith.mulf %221, %679 : vector<16x128xf32>
    %681 = arith.addf %678, %680 : vector<16x128xf32>
    %682 = vector.broadcast %156 : f32 to vector<16x128xf32>
    %683 = arith.mulf %224, %682 : vector<16x128xf32>
    %684 = arith.addf %681, %683 : vector<16x128xf32>
    %685 = vector.broadcast %172 : f32 to vector<16x128xf32>
    %686 = arith.addf %684, %685 : vector<16x128xf32>
    %cst_64 = arith.constant 0.000000e+00 : f32
    %687 = vector.broadcast %cst_64 : f32 to vector<16x128xf32>
    %688 = arith.maximumf %686, %687 : vector<16x128xf32>
    %689 = vector.broadcast %188 : f32 to vector<16x128xf32>
    %690 = arith.mulf %688, %689 : vector<16x128xf32>
    %691 = arith.addf %655, %690 : vector<16x128xf32>
    %692 = vector.broadcast %13 : f32 to vector<16x128xf32>
    %693 = arith.mulf %197, %692 : vector<16x128xf32>
    %694 = vector.broadcast %29 : f32 to vector<16x128xf32>
    %695 = arith.mulf %200, %694 : vector<16x128xf32>
    %696 = arith.addf %693, %695 : vector<16x128xf32>
    %697 = vector.broadcast %45 : f32 to vector<16x128xf32>
    %698 = arith.mulf %203, %697 : vector<16x128xf32>
    %699 = arith.addf %696, %698 : vector<16x128xf32>
    %700 = vector.broadcast %61 : f32 to vector<16x128xf32>
    %701 = arith.mulf %206, %700 : vector<16x128xf32>
    %702 = arith.addf %699, %701 : vector<16x128xf32>
    %703 = vector.broadcast %77 : f32 to vector<16x128xf32>
    %704 = arith.mulf %209, %703 : vector<16x128xf32>
    %705 = arith.addf %702, %704 : vector<16x128xf32>
    %706 = vector.broadcast %93 : f32 to vector<16x128xf32>
    %707 = arith.mulf %212, %706 : vector<16x128xf32>
    %708 = arith.addf %705, %707 : vector<16x128xf32>
    %709 = vector.broadcast %109 : f32 to vector<16x128xf32>
    %710 = arith.mulf %215, %709 : vector<16x128xf32>
    %711 = arith.addf %708, %710 : vector<16x128xf32>
    %712 = vector.broadcast %125 : f32 to vector<16x128xf32>
    %713 = arith.mulf %218, %712 : vector<16x128xf32>
    %714 = arith.addf %711, %713 : vector<16x128xf32>
    %715 = vector.broadcast %141 : f32 to vector<16x128xf32>
    %716 = arith.mulf %221, %715 : vector<16x128xf32>
    %717 = arith.addf %714, %716 : vector<16x128xf32>
    %718 = vector.broadcast %157 : f32 to vector<16x128xf32>
    %719 = arith.mulf %224, %718 : vector<16x128xf32>
    %720 = arith.addf %717, %719 : vector<16x128xf32>
    %721 = vector.broadcast %173 : f32 to vector<16x128xf32>
    %722 = arith.addf %720, %721 : vector<16x128xf32>
    %cst_65 = arith.constant 0.000000e+00 : f32
    %723 = vector.broadcast %cst_65 : f32 to vector<16x128xf32>
    %724 = arith.maximumf %722, %723 : vector<16x128xf32>
    %725 = vector.broadcast %189 : f32 to vector<16x128xf32>
    %726 = arith.mulf %724, %725 : vector<16x128xf32>
    %727 = arith.addf %691, %726 : vector<16x128xf32>
    %728 = vector.broadcast %14 : f32 to vector<16x128xf32>
    %729 = arith.mulf %197, %728 : vector<16x128xf32>
    %730 = vector.broadcast %30 : f32 to vector<16x128xf32>
    %731 = arith.mulf %200, %730 : vector<16x128xf32>
    %732 = arith.addf %729, %731 : vector<16x128xf32>
    %733 = vector.broadcast %46 : f32 to vector<16x128xf32>
    %734 = arith.mulf %203, %733 : vector<16x128xf32>
    %735 = arith.addf %732, %734 : vector<16x128xf32>
    %736 = vector.broadcast %62 : f32 to vector<16x128xf32>
    %737 = arith.mulf %206, %736 : vector<16x128xf32>
    %738 = arith.addf %735, %737 : vector<16x128xf32>
    %739 = vector.broadcast %78 : f32 to vector<16x128xf32>
    %740 = arith.mulf %209, %739 : vector<16x128xf32>
    %741 = arith.addf %738, %740 : vector<16x128xf32>
    %742 = vector.broadcast %94 : f32 to vector<16x128xf32>
    %743 = arith.mulf %212, %742 : vector<16x128xf32>
    %744 = arith.addf %741, %743 : vector<16x128xf32>
    %745 = vector.broadcast %110 : f32 to vector<16x128xf32>
    %746 = arith.mulf %215, %745 : vector<16x128xf32>
    %747 = arith.addf %744, %746 : vector<16x128xf32>
    %748 = vector.broadcast %126 : f32 to vector<16x128xf32>
    %749 = arith.mulf %218, %748 : vector<16x128xf32>
    %750 = arith.addf %747, %749 : vector<16x128xf32>
    %751 = vector.broadcast %142 : f32 to vector<16x128xf32>
    %752 = arith.mulf %221, %751 : vector<16x128xf32>
    %753 = arith.addf %750, %752 : vector<16x128xf32>
    %754 = vector.broadcast %158 : f32 to vector<16x128xf32>
    %755 = arith.mulf %224, %754 : vector<16x128xf32>
    %756 = arith.addf %753, %755 : vector<16x128xf32>
    %757 = vector.broadcast %174 : f32 to vector<16x128xf32>
    %758 = arith.addf %756, %757 : vector<16x128xf32>
    %cst_66 = arith.constant 0.000000e+00 : f32
    %759 = vector.broadcast %cst_66 : f32 to vector<16x128xf32>
    %760 = arith.maximumf %758, %759 : vector<16x128xf32>
    %761 = vector.broadcast %190 : f32 to vector<16x128xf32>
    %762 = arith.mulf %760, %761 : vector<16x128xf32>
    %763 = arith.addf %727, %762 : vector<16x128xf32>
    %764 = vector.broadcast %15 : f32 to vector<16x128xf32>
    %765 = arith.mulf %197, %764 : vector<16x128xf32>
    %766 = vector.broadcast %31 : f32 to vector<16x128xf32>
    %767 = arith.mulf %200, %766 : vector<16x128xf32>
    %768 = arith.addf %765, %767 : vector<16x128xf32>
    %769 = vector.broadcast %47 : f32 to vector<16x128xf32>
    %770 = arith.mulf %203, %769 : vector<16x128xf32>
    %771 = arith.addf %768, %770 : vector<16x128xf32>
    %772 = vector.broadcast %63 : f32 to vector<16x128xf32>
    %773 = arith.mulf %206, %772 : vector<16x128xf32>
    %774 = arith.addf %771, %773 : vector<16x128xf32>
    %775 = vector.broadcast %79 : f32 to vector<16x128xf32>
    %776 = arith.mulf %209, %775 : vector<16x128xf32>
    %777 = arith.addf %774, %776 : vector<16x128xf32>
    %778 = vector.broadcast %95 : f32 to vector<16x128xf32>
    %779 = arith.mulf %212, %778 : vector<16x128xf32>
    %780 = arith.addf %777, %779 : vector<16x128xf32>
    %781 = vector.broadcast %111 : f32 to vector<16x128xf32>
    %782 = arith.mulf %215, %781 : vector<16x128xf32>
    %783 = arith.addf %780, %782 : vector<16x128xf32>
    %784 = vector.broadcast %127 : f32 to vector<16x128xf32>
    %785 = arith.mulf %218, %784 : vector<16x128xf32>
    %786 = arith.addf %783, %785 : vector<16x128xf32>
    %787 = vector.broadcast %143 : f32 to vector<16x128xf32>
    %788 = arith.mulf %221, %787 : vector<16x128xf32>
    %789 = arith.addf %786, %788 : vector<16x128xf32>
    %790 = vector.broadcast %159 : f32 to vector<16x128xf32>
    %791 = arith.mulf %224, %790 : vector<16x128xf32>
    %792 = arith.addf %789, %791 : vector<16x128xf32>
    %793 = vector.broadcast %175 : f32 to vector<16x128xf32>
    %794 = arith.addf %792, %793 : vector<16x128xf32>
    %cst_67 = arith.constant 0.000000e+00 : f32
    %795 = vector.broadcast %cst_67 : f32 to vector<16x128xf32>
    %796 = arith.maximumf %794, %795 : vector<16x128xf32>
    %797 = vector.broadcast %191 : f32 to vector<16x128xf32>
    %798 = arith.mulf %796, %797 : vector<16x128xf32>
    %799 = arith.addf %763, %798 : vector<16x128xf32>
    %800 = vector.broadcast %192 : f32 to vector<16x128xf32>
    %801 = arith.addf %799, %800 : vector<16x128xf32>
    %802 = arith.index_cast %194 : i32 to index
    %c0_68 = arith.constant 0 : index
    %803 = vector.load %arg6[%802, %c0_68] : memref<16x128xf32, #tpu.memory_space<vmem>>, vector<16x128xf32>
    tpu.vector_store %arg6[%802, %c0_68], %801 {strides = array<i32>} : memref<16x128xf32, #tpu.memory_space<vmem>>, vector<16x128xf32>,
    %c1_i32 = arith.constant 1 : i32
    return
  }
  func.func @transform_0(%arg0: i32) -> (i32, i32, i32) {
    %c0_i32 = arith.constant 0 : i32
    %c0_i32_0 = arith.constant 0 : i32
    %c0_i32_1 = arith.constant 0 : i32
    return %c0_i32, %arg0, %c0_i32_0 : i32, i32, i32
  }
  func.func @transform_1(%arg0: i32) -> i32 {
    %c0_i32 = arith.constant 0 : i32
    %c0_i32_0 = arith.constant 0 : i32
    return %c0_i32 : i32
  }
  func.func @transform_2(%arg0: i32) -> i32 {
    %c0_i32 = arith.constant 0 : i32
    %c0_i32_0 = arith.constant 0 : i32
    return %c0_i32 : i32
  }
  func.func @transform_3(%arg0: i32) -> i32 {
    %c0_i32 = arith.constant 0 : i32
    %c0_i32_0 = arith.constant 0 : i32
    return %c0_i32 : i32
  }
  func.func @transform_4(%arg0: i32) -> i32 {
    %c0_i32 = arith.constant 0 : i32
    %c0_i32_0 = arith.constant 0 : i32
    return %c0_i32 : i32
  }
  func.func @transform_5(%arg0: i32) -> (i32, i32) {
    %c0_i32 = arith.constant 0 : i32
    %c0_i32_0 = arith.constant 0 : i32
    return %arg0, %c0_i32 : i32, i32
  }
}

</mosaic_0001>

<llo_original>
// kernel: tpu_custom_call.1
$region0: #{tpu_custom_call.1}
  #allocation0 [shape = 'u32[]', space=smem, size = 0x4, offset = 0x4, fixed_abs, tag = 'smem constant byte address 0x4 - core index']
  #allocation1 [shape = 'u32[72,128]{1,0:T(1,128)}', space=vmem, size = 0x9000, scoped, tag = 'internal scratch']
  #allocation2 [shape = 'f32[1]{0:T(128)S(6)}', space=smem, size = 0x200, scoped, tag = 'scoped memory for tpu_custom_call.1']
  %s0 = inlined_call_operand.hbm [shape: f32[10,16,128], index: 0, kind: input, shape index: {}]
  %s1 = inlined_call_operand.vmem [shape: f32[160], index: 1, kind: input, shape index: {}]
  %s2 = inlined_call_operand.vmem [shape: f32[16], index: 2, kind: input, shape index: {}]
  %s3 = inlined_call_operand.vmem [shape: f32[16], index: 3, kind: input, shape index: {}]
  %s4 = inlined_call_operand.<no memory space> [shape: f32[1], index: 4, kind: input, shape index: {}]
  %s5 = inlined_call_operand.hbm [shape: f32[16,128], index: 5, kind: output, shape index: {}]
  %s6 = sld [smem:[#allocation0]]
  $region46: #{tpu_custom_call.1} parent=0
    _
  %s8 = ssub.s32 1, %s6
  %s9 = scalar_select 0, %s8, %s6
  %10 = sst [smem:[#allocation2]] %s4
  $region1: #{tpu_custom_call.1} parent=0
    #allocation3 [shape = 'u8[81920]{0}', space=vmem, size = 0x14000, scoped, tag = 'input window, operand 0, single buffered']
    #allocation4 [shape = 's32[1]{0}', space=sflag, size = 0x4, scoped, tag = 'scoped memory for tpu_custom_call.1']
    #allocation5 [shape = 's32[1]{0}', space=sflag, size = 0x4, scoped, tag = 'scoped memory for tpu_custom_call.1']
    #allocation6 [shape = 's32[1]{0}', space=sflag, size = 0x4, scoped, tag = 'scoped memory for tpu_custom_call.1']
    #allocation7 [shape = 'u8[1024]{0}', space=smem, size = 0x400, scoped, tag = 'input window, operand 1, single buffered']
    #allocation8 [shape = 'u8[512]{0}', space=smem, size = 0x200, scoped, tag = 'input window, operand 2, single buffered']
    #allocation9 [shape = 's32[1]{0}', space=sflag, size = 0x4, scoped, tag = 'scoped memory for tpu_custom_call.1']
    #allocation10 [shape = 'u8[512]{0}', space=smem, size = 0x200, scoped, tag = 'input window, operand 3, single buffered']
    #allocation11 [shape = 'u8[8192]{0}', space=vmem, size = 0x2000, scoped, tag = 'output window, operand 0, single buffered']
    %11 = vsyncpa [#allocation4], 0
    %12 = vsyncpa [#allocation6], 0
    %13 = vsyncpa [#allocation9], 0
    %14 = vsyncpa [#allocation5], 0
    // Predicated region
    $region2: #{tpu_custom_call.1} parent=1 // pred_check
      _
    $region3: #{tpu_custom_call.1} parent=1 // pred_check_branch
      %16 = sbr.rel (0) target = $region5
    $region4: #{tpu_custom_call.1} parent=1 // pred_region
      %18 = vsyncadd [#allocation4], 0
      %s19 = sshll.u32 %s0, 4
      %s20 = int_to_ptr.hbm [resolvable:$true] %s19
      %s21 = sshll.u32 [#allocation3], 4
      %s22 = int_to_ptr.vmem [resolvable:$true] %s21
      %27 = dma.hbm_to_vmem [thread:$0]  %s20, 2560, %s22, [#allocation4], 128, 128, 8
    $region5: #{tpu_custom_call.1} parent=1 // pred_fallthru
      _
    // Predicated region
    $region6: #{tpu_custom_call.1} parent=1 // pred_check
      _
    $region7: #{tpu_custom_call.1} parent=1 // pred_check_branch
      %29 = sbr.rel (0) target = $region9
    $region8: #{tpu_custom_call.1} parent=1 // pred_region
      %31 = vsyncadd [#allocation6], 0
      %s33 = sshll.u32 %s1, 4
      %s34 = int_to_ptr.vmem [resolvable:$true] %s33
      %36 = dma.vmem_to_smem %s34, 32, [#allocation7], [#allocation6]
    $region9: #{tpu_custom_call.1} parent=1 // pred_fallthru
      _
    // Predicated region
    $region10: #{tpu_custom_call.1} parent=1 // pred_check
      _
    $region11: #{tpu_custom_call.1} parent=1 // pred_check_branch
      %38 = sbr.rel (0) target = $region13
    $region12: #{tpu_custom_call.1} parent=1 // pred_region
      %40 = vsyncadd [#allocation9], 0
      %s42 = sshll.u32 %s2, 4
      %s43 = int_to_ptr.vmem [resolvable:$true] %s42
      %45 = dma.vmem_to_smem %s43, 16, [#allocation8], [#allocation9]
    $region13: #{tpu_custom_call.1} parent=1 // pred_fallthru
      _
    // Predicated region
    $region14: #{tpu_custom_call.1} parent=1 // pred_check
      _
    $region15: #{tpu_custom_call.1} parent=1 // pred_check_branch
      %47 = sbr.rel (0) target = $region17
    $region16: #{tpu_custom_call.1} parent=1 // pred_region
      %49 = vsyncadd [#allocation9], 0
      %s51 = sshll.u32 %s3, 4
      %s52 = int_to_ptr.vmem [resolvable:$true] %s51
      %54 = dma.vmem_to_smem %s52, 16, [#allocation10], [#allocation9]
    $region17: #{tpu_custom_call.1} parent=1 // pred_fallthru
      _
    // Predicated region
    $region18: #{tpu_custom_call.1} parent=1 // pred_check
      _
    $region19: #{tpu_custom_call.1} parent=1 // pred_check_branch
      %56 = sbr.rel (0) target = $region21
    $region20: #{tpu_custom_call.1} parent=1 // pred_region
      _
    $region21: #{tpu_custom_call.1} parent=1 // pred_fallthru
      _
    // Predicated region
    $region22: #{tpu_custom_call.1} parent=1 // pred_check
      _
    $region23: #{tpu_custom_call.1} parent=1 // pred_check_branch
      %58 = sbr.rel (0) target = $region25
    $region24: #{tpu_custom_call.1} parent=1 // pred_region
      %60 = dma.done [#allocation4], 2560
    $region25: #{tpu_custom_call.1} parent=1 // pred_fallthru
      _
    // Predicated region
    $region26: #{tpu_custom_call.1} parent=1 // pred_check
      _
    $region27: #{tpu_custom_call.1} parent=1 // pred_check_branch
      %62 = sbr.rel (0) target = $region29
    $region28: #{tpu_custom_call.1} parent=1 // pred_region
      %64 = dma.done [#allocation6], 32
    $region29: #{tpu_custom_call.1} parent=1 // pred_fallthru
      _
    // Predicated region
    $region30: #{tpu_custom_call.1} parent=1 // pred_check
      _
    $region31: #{tpu_custom_call.1} parent=1 // pred_check_branch
      %66 = sbr.rel (0) target = $region33
    $region32: #{tpu_custom_call.1} parent=1 // pred_region
      %68 = dma.done [#allocation9], 16
    $region33: #{tpu_custom_call.1} parent=1 // pred_fallthru
      _
    // Predicated region
    $region34: #{tpu_custom_call.1} parent=1 // pred_check
      _
    $region35: #{tpu_custom_call.1} parent=1 // pred_check_branch
      %70 = sbr.rel (0) target = $region37
    $region36: #{tpu_custom_call.1} parent=1 // pred_region
      %72 = dma.done [#allocation9], 16
    $region37: #{tpu_custom_call.1} parent=1 // pred_fallthru
      _
    %73 = sfence
    %s74 = sld [smem:[#allocation7]]
    %s75 = sld [smem:[#allocation7 + $0x1]]
    %s76 = sld [smem:[#allocation7 + $0x2]]
    %s77 = sld [smem:[#allocation7 + $0x3]]
    %s78 = sld [smem:[#allocation7 + $0x4]]
    %s79 = sld [smem:[#allocation7 + $0x5]]
    %s80 = sld [smem:[#allocation7 + $0x6]]
    %s81 = sld [smem:[#allocation7 + $0x7]]
    %s82 = sld [smem:[#allocation7 + $0x8]]
    %s83 = sld [smem:[#allocation7 + $0x9]]
    %s84 = sld [smem:[#allocation7 + $0xa]]
    %s85 = sld [smem:[#allocation7 + $0xb]]
    %s86 = sld [smem:[#allocation7 + $0xc]]
    %s87 = sld [smem:[#allocation7 + $0xd]]
    %s88 = sld [smem:[#allocation7 + $0xe]]
    %s89 = sld [smem:[#allocation7 + $0xf]]
    %s90 = sld [smem:[#allocation7 + $0x10]]
    %s91 = sld [smem:[#allocation7 + $0x11]]
    %s92 = sld [smem:[#allocation7 + $0x12]]
    %s93 = sld [smem:[#allocation7 + $0x13]]
    %s94 = sld [smem:[#allocation7 + $0x14]]
    %s95 = sld [smem:[#allocation7 + $0x15]]
    %s96 = sld [smem:[#allocation7 + $0x16]]
    %s97 = sld [smem:[#allocation7 + $0x17]]
    %s98 = sld [smem:[#allocation7 + $0x18]]
    %s99 = sld [smem:[#allocation7 + $0x19]]
    %s100 = sld [smem:[#allocation7 + $0x1a]]
    %s101 = sld [smem:[#allocation7 + $0x1b]]
    %s102 = sld [smem:[#allocation7 + $0x1c]]
    %s103 = sld [smem:[#allocation7 + $0x1d]]
    %s104 = sld [smem:[#allocation7 + $0x1e]]
    %s105 = sld [smem:[#allocation7 + $0x1f]]
    %s106 = sld [smem:[#allocation7 + $0x20]]
    %s107 = sld [smem:[#allocation7 + $0x21]]
    %s108 = sld [smem:[#allocation7 + $0x22]]
    %s109 = sld [smem:[#allocation7 + $0x23]]
    %s110 = sld [smem:[#allocation7 + $0x24]]
    %s111 = sld [smem:[#allocation7 + $0x25]]
    %s112 = sld [smem:[#allocation7 + $0x26]]
    %s113 = sld [smem:[#allocation7 + $0x27]]
    %s114 = sld [smem:[#allocation7 + $0x28]]
    %s115 = sld [smem:[#allocation7 + $0x29]]
    %s116 = sld [smem:[#allocation7 + $0x2a]]
    %s117 = sld [smem:[#allocation7 + $0x2b]]
    %s118 = sld [smem:[#allocation7 + $0x2c]]
    %s119 = sld [smem:[#allocation7 + $0x2d]]
    %s120 = sld [smem:[#allocation7 + $0x2e]]
    %s121 = sld [smem:[#allocation7 + $0x2f]]
    %s122 = sld [smem:[#allocation7 + $0x30]]
    %s123 = sld [smem:[#allocation7 + $0x31]]
    %s124 = sld [smem:[#allocation7 + $0x32]]
    %s125 = sld [smem:[#allocation7 + $0x33]]
    %s126 = sld [smem:[#allocation7 + $0x34]]
    %s127 = sld [smem:[#allocation7 + $0x35]]
    %s128 = sld [smem:[#allocation7 + $0x36]]
    %s129 = sld [smem:[#allocation7 + $0x37]]
    %s130 = sld [smem:[#allocation7 + $0x38]]
    %s131 = sld [smem:[#allocation7 + $0x39]]
    %s132 = sld [smem:[#allocation7 + $0x3a]]
    %s133 = sld [smem:[#allocation7 + $0x3b]]
    %s134 = sld [smem:[#allocation7 + $0x3c]]
    %s135 = sld [smem:[#allocation7 + $0x3d]]
    %s136 = sld [smem:[#allocation7 + $0x3e]]
    %s137 = sld [smem:[#allocation7 + $0x3f]]
    %s138 = sld [smem:[#allocation7 + $0x40]]
    %s139 = sld [smem:[#allocation7 + $0x41]]
    %s140 = sld [smem:[#allocation7 + $0x42]]
    %s141 = sld [smem:[#allocation7 + $0x43]]
    %s142 = sld [smem:[#allocation7 + $0x44]]
    %s143 = sld [smem:[#allocation7 + $0x45]]
    %s144 = sld [smem:[#allocation7 + $0x46]]
    %s145 = sld [smem:[#allocation7 + $0x47]]
    %s146 = sld [smem:[#allocation7 + $0x48]]
    %s147 = sld [smem:[#allocation7 + $0x49]]
    %s148 = sld [smem:[#allocation7 + $0x4a]]
    %s149 = sld [smem:[#allocation7 + $0x4b]]
    %s150 = sld [smem:[#allocation7 + $0x4c]]
    %s151 = sld [smem:[#allocation7 + $0x4d]]
    %s152 = sld [smem:[#allocation7 + $0x4e]]
    %s153 = sld [smem:[#allocation7 + $0x4f]]
    %s154 = sld [smem:[#allocation7 + $0x50]]
    %s155 = sld [smem:[#allocation7 + $0x51]]
    %s156 = sld [smem:[#allocation7 + $0x52]]
    %s157 = sld [smem:[#allocation7 + $0x53]]
    %s158 = sld [smem:[#allocation7 + $0x54]]
    %s159 = sld [smem:[#allocation7 + $0x55]]
    %s160 = sld [smem:[#allocation7 + $0x56]]
    %s161 = sld [smem:[#allocation7 + $0x57]]
    %s162 = sld [smem:[#allocation7 + $0x58]]
    %s163 = sld [smem:[#allocation7 + $0x59]]
    %s164 = sld [smem:[#allocation7 + $0x5a]]
    %s165 = sld [smem:[#allocation7 + $0x5b]]
    %s166 = sld [smem:[#allocation7 + $0x5c]]
    %s167 = sld [smem:[#allocation7 + $0x5d]]
    %s168 = sld [smem:[#allocation7 + $0x5e]]
    %s169 = sld [smem:[#allocation7 + $0x5f]]
    %s170 = sld [smem:[#allocation7 + $0x60]]
    %s171 = sld [smem:[#allocation7 + $0x61]]
    %s172 = sld [smem:[#allocation7 + $0x62]]
    %s173 = sld [smem:[#allocation7 + $0x63]]
    %s174 = sld [smem:[#allocation7 + $0x64]]
    %s175 = sld [smem:[#allocation7 + $0x65]]
    %s176 = sld [smem:[#allocation7 + $0x66]]
    %s177 = sld [smem:[#allocation7 + $0x67]]
    %s178 = sld [smem:[#allocation7 + $0x68]]
    %s179 = sld [smem:[#allocation7 + $0x69]]
    %s180 = sld [smem:[#allocation7 + $0x6a]]
    %s181 = sld [smem:[#allocation7 + $0x6b]]
    %s182 = sld [smem:[#allocation7 + $0x6c]]
    %s183 = sld [smem:[#allocation7 + $0x6d]]
    %s184 = sld [smem:[#allocation7 + $0x6e]]
    %s185 = sld [smem:[#allocation7 + $0x6f]]
    %s186 = sld [smem:[#allocation7 + $0x70]]
    %s187 = sld [smem:[#allocation7 + $0x71]]
    %s188 = sld [smem:[#allocation7 + $0x72]]
    %s189 = sld [smem:[#allocation7 + $0x73]]
    %s190 = sld [smem:[#allocation7 + $0x74]]
    %s191 = sld [smem:[#allocation7 + $0x75]]
    %s192 = sld [smem:[#allocation7 + $0x76]]
    %s193 = sld [smem:[#allocation7 + $0x77]]
    %s194 = sld [smem:[#allocation7 + $0x78]]
    %s195 = sld [smem:[#allocation7 + $0x79]]
    %s196 = sld [smem:[#allocation7 + $0x7a]]
    %s197 = sld [smem:[#allocation7 + $0x7b]]
    %s198 = sld [smem:[#allocation7 + $0x7c]]
    %s199 = sld [smem:[#allocation7 + $0x7d]]
    %s200 = sld [smem:[#allocation7 + $0x7e]]
    %s201 = sld [smem:[#allocation7 + $0x7f]]
    %s202 = sld [smem:[#allocation7 + $0x80]]
    %s203 = sld [smem:[#allocation7 + $0x81]]
    %s204 = sld [smem:[#allocation7 + $0x82]]
    %s205 = sld [smem:[#allocation7 + $0x83]]
    %s206 = sld [smem:[#allocation7 + $0x84]]
    %s207 = sld [smem:[#allocation7 + $0x85]]
    %s208 = sld [smem:[#allocation7 + $0x86]]
    %s209 = sld [smem:[#allocation7 + $0x87]]
    %s210 = sld [smem:[#allocation7 + $0x88]]
    %s211 = sld [smem:[#allocation7 + $0x89]]
    %s212 = sld [smem:[#allocation7 + $0x8a]]
    %s213 = sld [smem:[#allocation7 + $0x8b]]
    %s214 = sld [smem:[#allocation7 + $0x8c]]
    %s215 = sld [smem:[#allocation7 + $0x8d]]
    %s216 = sld [smem:[#allocation7 + $0x8e]]
    %s217 = sld [smem:[#allocation7 + $0x8f]]
    %s218 = sld [smem:[#allocation7 + $0x90]]
    %s219 = sld [smem:[#allocation7 + $0x91]]
    %s220 = sld [smem:[#allocation7 + $0x92]]
    %s221 = sld [smem:[#allocation7 + $0x93]]
    %s222 = sld [smem:[#allocation7 + $0x94]]
    %s223 = sld [smem:[#allocation7 + $0x95]]
    %s224 = sld [smem:[#allocation7 + $0x96]]
    %s225 = sld [smem:[#allocation7 + $0x97]]
    %s226 = sld [smem:[#allocation7 + $0x98]]
    %s227 = sld [smem:[#allocation7 + $0x99]]
    %s228 = sld [smem:[#allocation7 + $0x9a]]
    %s229 = sld [smem:[#allocation7 + $0x9b]]
    %s230 = sld [smem:[#allocation7 + $0x9c]]
    %s231 = sld [smem:[#allocation7 + $0x9d]]
    %s232 = sld [smem:[#allocation7 + $0x9e]]
    %s233 = sld [smem:[#allocation7 + $0x9f]]
    %s234 = sld [smem:[#allocation8]]
    %s235 = sld [smem:[#allocation8 + $0x1]]
    %s236 = sld [smem:[#allocation8 + $0x2]]
    %s237 = sld [smem:[#allocation8 + $0x3]]
    %s238 = sld [smem:[#allocation8 + $0x4]]
    %s239 = sld [smem:[#allocation8 + $0x5]]
    %s240 = sld [smem:[#allocation8 + $0x6]]
    %s241 = sld [smem:[#allocation8 + $0x7]]
    %s242 = sld [smem:[#allocation8 + $0x8]]
    %s243 = sld [smem:[#allocation8 + $0x9]]
    %s244 = sld [smem:[#allocation8 + $0xa]]
    %s245 = sld [smem:[#allocation8 + $0xb]]
    %s246 = sld [smem:[#allocation8 + $0xc]]
    %s247 = sld [smem:[#allocation8 + $0xd]]
    %s248 = sld [smem:[#allocation8 + $0xe]]
    %s249 = sld [smem:[#allocation8 + $0xf]]
    %s250 = sld [smem:[#allocation10]]
    %s251 = sld [smem:[#allocation10 + $0x1]]
    %s252 = sld [smem:[#allocation10 + $0x2]]
    %s253 = sld [smem:[#allocation10 + $0x3]]
    %s254 = sld [smem:[#allocation10 + $0x4]]
    %s255 = sld [smem:[#allocation10 + $0x5]]
    %s256 = sld [smem:[#allocation10 + $0x6]]
    %s257 = sld [smem:[#allocation10 + $0x7]]
    %s258 = sld [smem:[#allocation10 + $0x8]]
    %s259 = sld [smem:[#allocation10 + $0x9]]
    %s260 = sld [smem:[#allocation10 + $0xa]]
    %s261 = sld [smem:[#allocation10 + $0xb]]
    %s262 = sld [smem:[#allocation10 + $0xc]]
    %s263 = sld [smem:[#allocation10 + $0xd]]
    %s264 = sld [smem:[#allocation10 + $0xe]]
    %s265 = sld [smem:[#allocation10 + $0xf]]
    %s266 = sld [smem:[#allocation2]]
    %v267 = vld [vmem:[#allocation3] sm:$0xff]
    %v268 = vld [vmem:[#allocation3 + $0x8] sm:$0xff]
    %s269 = sadd.s32 0, 16
    %s270 = scalar_lea.vmem [#allocation3], %s269
    %v271 = vld [vmem:[%s270] sm:$0xff]
    %v272 = vld [vmem:[%s270 + $0x8] sm:$0xff]
    %s273 = sadd.s32 0, 32
    %s274 = scalar_lea.vmem [#allocation3], %s273
    %v275 = vld [vmem:[%s274] sm:$0xff]
    %v276 = vld [vmem:[%s274 + $0x8] sm:$0xff]
    %s277 = sadd.s32 0, 48
    %s278 = scalar_lea.vmem [#allocation3], %s277
    %v279 = vld [vmem:[%s278] sm:$0xff]
    %v280 = vld [vmem:[%s278 + $0x8] sm:$0xff]
    %s281 = sadd.s32 0, 64
    %s282 = scalar_lea.vmem [#allocation3], %s281
    %v283 = vld [vmem:[%s282] sm:$0xff]
    %v284 = vld [vmem:[%s282 + $0x8] sm:$0xff]
    %s285 = sadd.s32 0, 80
    %s286 = scalar_lea.vmem [#allocation3], %s285
    %v287 = vld [vmem:[%s286] sm:$0xff]
    %v288 = vld [vmem:[%s286 + $0x8] sm:$0xff]
    %s289 = sadd.s32 0, 96
    %s290 = scalar_lea.vmem [#allocation3], %s289
    %v291 = vld [vmem:[%s290] sm:$0xff]
    %v292 = vld [vmem:[%s290 + $0x8] sm:$0xff]
    %s293 = sadd.s32 0, 112
    %s294 = scalar_lea.vmem [#allocation3], %s293
    %v295 = vld [vmem:[%s294] sm:$0xff]
    %v296 = vld [vmem:[%s294 + $0x8] sm:$0xff]
    %s297 = sadd.s32 0, 128
    %s298 = scalar_lea.vmem [#allocation3], %s297
    %v299 = vld [vmem:[%s298] sm:$0xff]
    %v300 = vld [vmem:[%s298 + $0x8] sm:$0xff]
    %s301 = sadd.s32 0, 144
    %s302 = scalar_lea.vmem [#allocation3], %s301
    %v303 = vld [vmem:[%s302] sm:$0xff]
    %v304 = vld [vmem:[%s302 + $0x8] sm:$0xff]
    %v305 = vstv %s74
    %v306 = vmul.f32 %v267, %v305
    %v307 = vmul.f32 %v268, %v305
    %v308 = vstv %s90
    %v309 = vmul.f32 %v271, %v308
    %v310 = vmul.f32 %v272, %v308
    %v311 = vadd.f32 %v306, %v309
    %v312 = vadd.f32 %v307, %v310
    %v313 = vstv %s106
    %v314 = vmul.f32 %v275, %v313
    %v315 = vmul.f32 %v276, %v313
    %v316 = vadd.f32 %v311, %v314
    %v317 = vadd.f32 %v312, %v315
    %v318 = vstv %s122
    %v319 = vmul.f32 %v279, %v318
    %v320 = vmul.f32 %v280, %v318
    %v321 = vadd.f32 %v316, %v319
    %v322 = vadd.f32 %v317, %v320
    %v323 = vstv %s138
    %v324 = vmul.f32 %v283, %v323
    %v325 = vmul.f32 %v284, %v323
    %v326 = vadd.f32 %v321, %v324
    %v327 = vadd.f32 %v322, %v325
    %v328 = vstv %s154
    %v329 = vmul.f32 %v287, %v328
    %v330 = vmul.f32 %v288, %v328
    %v331 = vadd.f32 %v326, %v329
    %v332 = vadd.f32 %v327, %v330
    %v333 = vstv %s170
    %v334 = vmul.f32 %v291, %v333
    %v335 = vmul.f32 %v292, %v333
    %v336 = vadd.f32 %v331, %v334
    %v337 = vadd.f32 %v332, %v335
    %v338 = vstv %s186
    %v339 = vmul.f32 %v295, %v338
    %v340 = vmul.f32 %v296, %v338
    %v341 = vadd.f32 %v336, %v339
    %v342 = vadd.f32 %v337, %v340
    %v343 = vstv %s202
    %v344 = vmul.f32 %v299, %v343
    %v345 = vmul.f32 %v300, %v343
    %v346 = vadd.f32 %v341, %v344
    %v347 = vadd.f32 %v342, %v345
    %v348 = vstv %s218
    %v349 = vmul.f32 %v303, %v348
    %v350 = vmul.f32 %v304, %v348
    %v351 = vadd.f32 %v346, %v349
    %v352 = vadd.f32 %v347, %v350
    %v353 = vstv %s234
    %v354 = vadd.f32 %v351, %v353
    %v355 = vadd.f32 %v352, %v353
    %v356 = vmax.f32 %v354, 0.0
    %v357 = vmax.f32 %v355, 0.0
    %v358 = vstv %s250
    %v359 = vmul.f32 %v356, %v358
    %v360 = vmul.f32 %v357, %v358
    %v361 = vstv %s75
    %v362 = vmul.f32 %v267, %v361
    %v363 = vmul.f32 %v268, %v361
    %v364 = vstv %s91
    %v365 = vmul.f32 %v271, %v364
    %v366 = vmul.f32 %v272, %v364
    %v367 = vadd.f32 %v362, %v365
    %v368 = vadd.f32 %v363, %v366
    %v369 = vstv %s107
    %v370 = vmul.f32 %v275, %v369
    %v371 = vmul.f32 %v276, %v369
    %v372 = vadd.f32 %v367, %v370
    %v373 = vadd.f32 %v368, %v371
    %v374 = vstv %s123
    %v375 = vmul.f32 %v279, %v374
    %v376 = vmul.f32 %v280, %v374
    %v377 = vadd.f32 %v372, %v375
    %v378 = vadd.f32 %v373, %v376
    %v379 = vstv %s139
    %v380 = vmul.f32 %v283, %v379
    %v381 = vmul.f32 %v284, %v379
    %v382 = vadd.f32 %v377, %v380
    %v383 = vadd.f32 %v378, %v381
    %v384 = vstv %s155
    %v385 = vmul.f32 %v287, %v384
    %v386 = vmul.f32 %v288, %v384
    %v387 = vadd.f32 %v382, %v385
    %v388 = vadd.f32 %v383, %v386
    %v389 = vstv %s171
    %v390 = vmul.f32 %v291, %v389
    %v391 = vmul.f32 %v292, %v389
    %v392 = vadd.f32 %v387, %v390
    %v393 = vadd.f32 %v388, %v391
    %v394 = vstv %s187
    %v395 = vmul.f32 %v295, %v394
    %v396 = vmul.f32 %v296, %v394
    %v397 = vadd.f32 %v392, %v395
    %v398 = vadd.f32 %v393, %v396
    %v399 = vstv %s203
    %v400 = vmul.f32 %v299, %v399
    %v401 = vmul.f32 %v300, %v399
    %v402 = vadd.f32 %v397, %v400
    %v403 = vadd.f32 %v398, %v401
    %v404 = vstv %s219
    %v405 = vmul.f32 %v303, %v404
    %v406 = vmul.f32 %v304, %v404
    %v407 = vadd.f32 %v402, %v405
    %v408 = vadd.f32 %v403, %v406
    %v409 = vstv %s235
    %v410 = vadd.f32 %v407, %v409
    %v411 = vadd.f32 %v408, %v409
    %v412 = vmax.f32 %v410, 0.0
    %v413 = vmax.f32 %v411, 0.0
    %v414 = vstv %s251
    %v415 = vmul.f32 %v412, %v414
    %v416 = vmul.f32 %v413, %v414
    %v417 = vadd.f32 %v359, %v415
    %v418 = vadd.f32 %v360, %v416
    %v419 = vstv %s76
    %v420 = vmul.f32 %v267, %v419
    %v421 = vmul.f32 %v268, %v419
    %v422 = vstv %s92
    %v423 = vmul.f32 %v271, %v422
    %v424 = vmul.f32 %v272, %v422
    %v425 = vadd.f32 %v420, %v423
    %v426 = vadd.f32 %v421, %v424
    %v427 = vstv %s108
    %v428 = vmul.f32 %v275, %v427
    %v429 = vmul.f32 %v276, %v427
    %v430 = vadd.f32 %v425, %v428
    %v431 = vadd.f32 %v426, %v429
    %v432 = vstv %s124
    %v433 = vmul.f32 %v279, %v432
    %v434 = vmul.f32 %v280, %v432
    %v435 = vadd.f32 %v430, %v433
    %v436 = vadd.f32 %v431, %v434
    %v437 = vstv %s140
    %v438 = vmul.f32 %v283, %v437
    %v439 = vmul.f32 %v284, %v437
    %v440 = vadd.f32 %v435, %v438
    %v441 = vadd.f32 %v436, %v439
    %v442 = vstv %s156
    %v443 = vmul.f32 %v287, %v442
    %v444 = vmul.f32 %v288, %v442
    %v445 = vadd.f32 %v440, %v443
    %v446 = vadd.f32 %v441, %v444
    %v447 = vstv %s172
    %v448 = vmul.f32 %v291, %v447
    %v449 = vmul.f32 %v292, %v447
    %v450 = vadd.f32 %v445, %v448
    %v451 = vadd.f32 %v446, %v449
    %v452 = vstv %s188
    %v453 = vmul.f32 %v295, %v452
    %v454 = vmul.f32 %v296, %v452
    %v455 = vadd.f32 %v450, %v453
    %v456 = vadd.f32 %v451, %v454
    %v457 = vstv %s204
    %v458 = vmul.f32 %v299, %v457
    %v459 = vmul.f32 %v300, %v457
    %v460 = vadd.f32 %v455, %v458
    %v461 = vadd.f32 %v456, %v459
    %v462 = vstv %s220
    %v463 = vmul.f32 %v303, %v462
    %v464 = vmul.f32 %v304, %v462
    %v465 = vadd.f32 %v460, %v463
    %v466 = vadd.f32 %v461, %v464
    %v467 = vstv %s236
    %v468 = vadd.f32 %v465, %v467
    %v469 = vadd.f32 %v466, %v467
    %v470 = vmax.f32 %v468, 0.0
    %v471 = vmax.f32 %v469, 0.0
    %v472 = vstv %s252
    %v473 = vmul.f32 %v470, %v472
    %v474 = vmul.f32 %v471, %v472
    %v475 = vadd.f32 %v417, %v473
    %v476 = vadd.f32 %v418, %v474
    %v477 = vstv %s77
    %v478 = vmul.f32 %v267, %v477
    %v479 = vmul.f32 %v268, %v477
    %v480 = vstv %s93
    %v481 = vmul.f32 %v271, %v480
    %v482 = vmul.f32 %v272, %v480
    %v483 = vadd.f32 %v478, %v481
    %v484 = vadd.f32 %v479, %v482
    %v485 = vstv %s109
    %v486 = vmul.f32 %v275, %v485
    %v487 = vmul.f32 %v276, %v485
    %v488 = vadd.f32 %v483, %v486
    %v489 = vadd.f32 %v484, %v487
    %v490 = vstv %s125
    %v491 = vmul.f32 %v279, %v490
    %v492 = vmul.f32 %v280, %v490
    %v493 = vadd.f32 %v488, %v491
    %v494 = vadd.f32 %v489, %v492
    %v495 = vstv %s141
    %v496 = vmul.f32 %v283, %v495
    %v497 = vmul.f32 %v284, %v495
    %v498 = vadd.f32 %v493, %v496
    %v499 = vadd.f32 %v494, %v497
    %v500 = vstv %s157
    %v501 = vmul.f32 %v287, %v500
    %v502 = vmul.f32 %v288, %v500
    %v503 = vadd.f32 %v498, %v501
    %v504 = vadd.f32 %v499, %v502
    %v505 = vstv %s173
    %v506 = vmul.f32 %v291, %v505
    %v507 = vmul.f32 %v292, %v505
    %v508 = vadd.f32 %v503, %v506
    %v509 = vadd.f32 %v504, %v507
    %v510 = vstv %s189
    %v511 = vmul.f32 %v295, %v510
    %v512 = vmul.f32 %v296, %v510
    %v513 = vadd.f32 %v508, %v511
    %v514 = vadd.f32 %v509, %v512
    %v515 = vstv %s205
    %v516 = vmul.f32 %v299, %v515
    %v517 = vmul.f32 %v300, %v515
    %v518 = vadd.f32 %v513, %v516
    %v519 = vadd.f32 %v514, %v517
    %v520 = vstv %s221
    %v521 = vmul.f32 %v303, %v520
    %v522 = vmul.f32 %v304, %v520
    %v523 = vadd.f32 %v518, %v521
    %v524 = vadd.f32 %v519, %v522
    %v525 = vstv %s237
    %v526 = vadd.f32 %v523, %v525
    %v527 = vadd.f32 %v524, %v525
    %v528 = vmax.f32 %v526, 0.0
    %v529 = vmax.f32 %v527, 0.0
    %v530 = vstv %s253
    %v531 = vmul.f32 %v528, %v530
    %v532 = vmul.f32 %v529, %v530
    %v533 = vadd.f32 %v475, %v531
    %v534 = vadd.f32 %v476, %v532
    %v535 = vstv %s78
    %v536 = vmul.f32 %v267, %v535
    %v537 = vmul.f32 %v268, %v535
    %v538 = vstv %s94
    %v539 = vmul.f32 %v271, %v538
    %v540 = vmul.f32 %v272, %v538
    %v541 = vadd.f32 %v536, %v539
    %v542 = vadd.f32 %v537, %v540
    %v543 = vstv %s110
    %v544 = vmul.f32 %v275, %v543
    %v545 = vmul.f32 %v276, %v543
    %v546 = vadd.f32 %v541, %v544
    %v547 = vadd.f32 %v542, %v545
    %v548 = vstv %s126
    %v549 = vmul.f32 %v279, %v548
    %v550 = vmul.f32 %v280, %v548
    %v551 = vadd.f32 %v546, %v549
    %v552 = vadd.f32 %v547, %v550
    %v553 = vstv %s142
    %v554 = vmul.f32 %v283, %v553
    %v555 = vmul.f32 %v284, %v553
    %v556 = vadd.f32 %v551, %v554
    %v557 = vadd.f32 %v552, %v555
    %v558 = vstv %s158
    %v559 = vmul.f32 %v287, %v558
    %v560 = vmul.f32 %v288, %v558
    %v561 = vadd.f32 %v556, %v559
    %v562 = vadd.f32 %v557, %v560
    %v563 = vstv %s174
    %v564 = vmul.f32 %v291, %v563
    %v565 = vmul.f32 %v292, %v563
    %v566 = vadd.f32 %v561, %v564
    %v567 = vadd.f32 %v562, %v565
    %v568 = vstv %s190
    %v569 = vmul.f32 %v295, %v568
    %v570 = vmul.f32 %v296, %v568
    %v571 = vadd.f32 %v566, %v569
    %v572 = vadd.f32 %v567, %v570
    %v573 = vstv %s206
    %v574 = vmul.f32 %v299, %v573
    %v575 = vmul.f32 %v300, %v573
    %v576 = vadd.f32 %v571, %v574
    %v577 = vadd.f32 %v572, %v575
    %v578 = vstv %s222
    %v579 = vmul.f32 %v303, %v578
    %v580 = vmul.f32 %v304, %v578
    %v581 = vadd.f32 %v576, %v579
    %v582 = vadd.f32 %v577, %v580
    %v583 = vstv %s238
    %v584 = vadd.f32 %v581, %v583
    %v585 = vadd.f32 %v582, %v583
    %v586 = vmax.f32 %v584, 0.0
    %v587 = vmax.f32 %v585, 0.0
    %v588 = vstv %s254
    %v589 = vmul.f32 %v586, %v588
    %v590 = vmul.f32 %v587, %v588
    %v591 = vadd.f32 %v533, %v589
    %v592 = vadd.f32 %v534, %v590
    %v593 = vstv %s79
    %v594 = vmul.f32 %v267, %v593
    %v595 = vmul.f32 %v268, %v593
    %v596 = vstv %s95
    %v597 = vmul.f32 %v271, %v596
    %v598 = vmul.f32 %v272, %v596
    %v599 = vadd.f32 %v594, %v597
    %v600 = vadd.f32 %v595, %v598
    %v601 = vstv %s111
    %v602 = vmul.f32 %v275, %v601
    %v603 = vmul.f32 %v276, %v601
    %v604 = vadd.f32 %v599, %v602
    %v605 = vadd.f32 %v600, %v603
    %v606 = vstv %s127
    %v607 = vmul.f32 %v279, %v606
    %v608 = vmul.f32 %v280, %v606
    %v609 = vadd.f32 %v604, %v607
    %v610 = vadd.f32 %v605, %v608
    %v611 = vstv %s143
    %v612 = vmul.f32 %v283, %v611
    %v613 = vmul.f32 %v284, %v611
    %v614 = vadd.f32 %v609, %v612
    %v615 = vadd.f32 %v610, %v613
    %v616 = vstv %s159
    %v617 = vmul.f32 %v287, %v616
    %v618 = vmul.f32 %v288, %v616
    %v619 = vadd.f32 %v614, %v617
    %v620 = vadd.f32 %v615, %v618
    %v621 = vstv %s175
    %v622 = vmul.f32 %v291, %v621
    %v623 = vmul.f32 %v292, %v621
    %v624 = vadd.f32 %v619, %v622
    %v625 = vadd.f32 %v620, %v623
    %v626 = vstv %s191
    %v627 = vmul.f32 %v295, %v626
    %v628 = vmul.f32 %v296, %v626
    %v629 = vadd.f32 %v624, %v627
    %v630 = vadd.f32 %v625, %v628
    %v631 = vstv %s207
    %v632 = vmul.f32 %v299, %v631
    %v633 = vmul.f32 %v300, %v631
    %v634 = vadd.f32 %v629, %v632
    %v635 = vadd.f32 %v630, %v633
    %v636 = vstv %s223
    %v637 = vmul.f32 %v303, %v636
    %v638 = vmul.f32 %v304, %v636
    %v639 = vadd.f32 %v634, %v637
    %v640 = vadd.f32 %v635, %v638
    %v641 = vstv %s239
    %v642 = vadd.f32 %v639, %v641
    %v643 = vadd.f32 %v640, %v641
    %v644 = vmax.f32 %v642, 0.0
    %v645 = vmax.f32 %v643, 0.0
    %v646 = vstv %s255
    %v647 = vmul.f32 %v644, %v646
    %v648 = vmul.f32 %v645, %v646
    %v649 = vadd.f32 %v591, %v647
    %v650 = vadd.f32 %v592, %v648
    %v651 = vstv %s80
    %v652 = vmul.f32 %v267, %v651
    %v653 = vmul.f32 %v268, %v651
    %v654 = vstv %s96
    %v655 = vmul.f32 %v271, %v654
    %v656 = vmul.f32 %v272, %v654
    %v657 = vadd.f32 %v652, %v655
    %v658 = vadd.f32 %v653, %v656
    %v659 = vstv %s112
    %v660 = vmul.f32 %v275, %v659
    %v661 = vmul.f32 %v276, %v659
    %v662 = vadd.f32 %v657, %v660
    %v663 = vadd.f32 %v658, %v661
    %v664 = vstv %s128
    %v665 = vmul.f32 %v279, %v664
    %v666 = vmul.f32 %v280, %v664
    %v667 = vadd.f32 %v662, %v665
    %v668 = vadd.f32 %v663, %v666
    %v669 = vstv %s144
    %v670 = vmul.f32 %v283, %v669
    %v671 = vmul.f32 %v284, %v669
    %v672 = vadd.f32 %v667, %v670
    %v673 = vadd.f32 %v668, %v671
    %v674 = vstv %s160
    %v675 = vmul.f32 %v287, %v674
    %v676 = vmul.f32 %v288, %v674
    %v677 = vadd.f32 %v672, %v675
    %v678 = vadd.f32 %v673, %v676
    %v679 = vstv %s176
    %v680 = vmul.f32 %v291, %v679
    %v681 = vmul.f32 %v292, %v679
    %v682 = vadd.f32 %v677, %v680
    %v683 = vadd.f32 %v678, %v681
    %v684 = vstv %s192
    %v685 = vmul.f32 %v295, %v684
    %v686 = vmul.f32 %v296, %v684
    %v687 = vadd.f32 %v682, %v685
    %v688 = vadd.f32 %v683, %v686
    %v689 = vstv %s208
    %v690 = vmul.f32 %v299, %v689
    %v691 = vmul.f32 %v300, %v689
    %v692 = vadd.f32 %v687, %v690
    %v693 = vadd.f32 %v688, %v691
    %v694 = vstv %s224
    %v695 = vmul.f32 %v303, %v694
    %v696 = vmul.f32 %v304, %v694
    %v697 = vadd.f32 %v692, %v695
    %v698 = vadd.f32 %v693, %v696
    %v699 = vstv %s240
    %v700 = vadd.f32 %v697, %v699
    %v701 = vadd.f32 %v698, %v699
    %v702 = vmax.f32 %v700, 0.0
    %v703 = vmax.f32 %v701, 0.0
    %v704 = vstv %s256
    %v705 = vmul.f32 %v702, %v704
    %v706 = vmul.f32 %v703, %v704
    %v707 = vadd.f32 %v649, %v705
    %v708 = vadd.f32 %v650, %v706
    %v709 = vstv %s81
    %v710 = vmul.f32 %v267, %v709
    %v711 = vmul.f32 %v268, %v709
    %v712 = vstv %s97
    %v713 = vmul.f32 %v271, %v712
    %v714 = vmul.f32 %v272, %v712
    %v715 = vadd.f32 %v710, %v713
    %v716 = vadd.f32 %v711, %v714
    %v717 = vstv %s113
    %v718 = vmul.f32 %v275, %v717
    %v719 = vmul.f32 %v276, %v717
    %v720 = vadd.f32 %v715, %v718
    %v721 = vadd.f32 %v716, %v719
    %v722 = vstv %s129
    %v723 = vmul.f32 %v279, %v722
    %v724 = vmul.f32 %v280, %v722
    %v725 = vadd.f32 %v720, %v723
    %v726 = vadd.f32 %v721, %v724
    %v727 = vstv %s145
    %v728 = vmul.f32 %v283, %v727
    %v729 = vmul.f32 %v284, %v727
    %v730 = vadd.f32 %v725, %v728
    %v731 = vadd.f32 %v726, %v729
    %v732 = vstv %s161
    %v733 = vmul.f32 %v287, %v732
    %v734 = vmul.f32 %v288, %v732
    %v735 = vadd.f32 %v730, %v733
    %v736 = vadd.f32 %v731, %v734
    %v737 = vstv %s177
    %v738 = vmul.f32 %v291, %v737
    %v739 = vmul.f32 %v292, %v737
    %v740 = vadd.f32 %v735, %v738
    %v741 = vadd.f32 %v736, %v739
    %v742 = vstv %s193
    %v743 = vmul.f32 %v295, %v742
    %v744 = vmul.f32 %v296, %v742
    %v745 = vadd.f32 %v740, %v743
    %v746 = vadd.f32 %v741, %v744
    %v747 = vstv %s209
    %v748 = vmul.f32 %v299, %v747
    %v749 = vmul.f32 %v300, %v747
    %v750 = vadd.f32 %v745, %v748
    %v751 = vadd.f32 %v746, %v749
    %v752 = vstv %s225
    %v753 = vmul.f32 %v303, %v752
    %v754 = vmul.f32 %v304, %v752
    %v755 = vadd.f32 %v750, %v753
    %v756 = vadd.f32 %v751, %v754
    %v757 = vstv %s241
    %v758 = vadd.f32 %v755, %v757
    %v759 = vadd.f32 %v756, %v757
    %v760 = vmax.f32 %v758, 0.0
    %v761 = vmax.f32 %v759, 0.0
    %v762 = vstv %s257
    %v763 = vmul.f32 %v760, %v762
    %v764 = vmul.f32 %v761, %v762
    %v765 = vadd.f32 %v707, %v763
    %v766 = vadd.f32 %v708, %v764
    %v767 = vstv %s82
    %v768 = vmul.f32 %v267, %v767
    %v769 = vmul.f32 %v268, %v767
    %v770 = vstv %s98
    %v771 = vmul.f32 %v271, %v770
    %v772 = vmul.f32 %v272, %v770
    %v773 = vadd.f32 %v768, %v771
    %v774 = vadd.f32 %v769, %v772
    %v775 = vstv %s114
    %v776 = vmul.f32 %v275, %v775
    %v777 = vmul.f32 %v276, %v775
    %v778 = vadd.f32 %v773, %v776
    %v779 = vadd.f32 %v774, %v777
    %v780 = vstv %s130
    %v781 = vmul.f32 %v279, %v780
    %v782 = vmul.f32 %v280, %v780
    %v783 = vadd.f32 %v778, %v781
    %v784 = vadd.f32 %v779, %v782
    %v785 = vstv %s146
    %v786 = vmul.f32 %v283, %v785
    %v787 = vmul.f32 %v284, %v785
    %v788 = vadd.f32 %v783, %v786
    %v789 = vadd.f32 %v784, %v787
    %v790 = vstv %s162
    %v791 = vmul.f32 %v287, %v790
    %v792 = vmul.f32 %v288, %v790
    %v793 = vadd.f32 %v788, %v791
    %v794 = vadd.f32 %v789, %v792
    %v795 = vstv %s178
    %v796 = vmul.f32 %v291, %v795
    %v797 = vmul.f32 %v292, %v795
    %v798 = vadd.f32 %v793, %v796
    %v799 = vadd.f32 %v794, %v797
    %v800 = vstv %s194
    %v801 = vmul.f32 %v295, %v800
    %v802 = vmul.f32 %v296, %v800
    %v803 = vadd.f32 %v798, %v801
    %v804 = vadd.f32 %v799, %v802
    %v805 = vstv %s210
    %v806 = vmul.f32 %v299, %v805
    %v807 = vmul.f32 %v300, %v805
    %v808 = vadd.f32 %v803, %v806
    %v809 = vadd.f32 %v804, %v807
    %v810 = vstv %s226
    %v811 = vmul.f32 %v303, %v810
    %v812 = vmul.f32 %v304, %v810
    %v813 = vadd.f32 %v808, %v811
    %v814 = vadd.f32 %v809, %v812
    %v815 = vstv %s242
    %v816 = vadd.f32 %v813, %v815
    %v817 = vadd.f32 %v814, %v815
    %v818 = vmax.f32 %v816, 0.0
    %v819 = vmax.f32 %v817, 0.0
    %v820 = vstv %s258
    %v821 = vmul.f32 %v818, %v820
    %v822 = vmul.f32 %v819, %v820
    %v823 = vadd.f32 %v765, %v821
    %v824 = vadd.f32 %v766, %v822
    %v825 = vstv %s83
    %v826 = vmul.f32 %v267, %v825
    %v827 = vmul.f32 %v268, %v825
    %v828 = vstv %s99
    %v829 = vmul.f32 %v271, %v828
    %v830 = vmul.f32 %v272, %v828
    %v831 = vadd.f32 %v826, %v829
    %v832 = vadd.f32 %v827, %v830
    %v833 = vstv %s115
    %v834 = vmul.f32 %v275, %v833
    %v835 = vmul.f32 %v276, %v833
    %v836 = vadd.f32 %v831, %v834
    %v837 = vadd.f32 %v832, %v835
    %v838 = vstv %s131
    %v839 = vmul.f32 %v279, %v838
    %v840 = vmul.f32 %v280, %v838
    %v841 = vadd.f32 %v836, %v839
    %v842 = vadd.f32 %v837, %v840
    %v843 = vstv %s147
    %v844 = vmul.f32 %v283, %v843
    %v845 = vmul.f32 %v284, %v843
    %v846 = vadd.f32 %v841, %v844
    %v847 = vadd.f32 %v842, %v845
    %v848 = vstv %s163
    %v849 = vmul.f32 %v287, %v848
    %v850 = vmul.f32 %v288, %v848
    %v851 = vadd.f32 %v846, %v849
    %v852 = vadd.f32 %v847, %v850
    %v853 = vstv %s179
    %v854 = vmul.f32 %v291, %v853
    %v855 = vmul.f32 %v292, %v853
    %v856 = vadd.f32 %v851, %v854
    %v857 = vadd.f32 %v852, %v855
    %v858 = vstv %s195
    %v859 = vmul.f32 %v295, %v858
    %v860 = vmul.f32 %v296, %v858
    %v861 = vadd.f32 %v856, %v859
    %v862 = vadd.f32 %v857, %v860
    %v863 = vstv %s211
    %v864 = vmul.f32 %v299, %v863
    %v865 = vmul.f32 %v300, %v863
    %v866 = vadd.f32 %v861, %v864
    %v867 = vadd.f32 %v862, %v865
    %v868 = vstv %s227
    %v869 = vmul.f32 %v303, %v868
    %v870 = vmul.f32 %v304, %v868
    %v871 = vadd.f32 %v866, %v869
    %v872 = vadd.f32 %v867, %v870
    %v873 = vstv %s243
    %v874 = vadd.f32 %v871, %v873
    %v875 = vadd.f32 %v872, %v873
    %v876 = vmax.f32 %v874, 0.0
    %v877 = vmax.f32 %v875, 0.0
    %v878 = vstv %s259
    %v879 = vmul.f32 %v876, %v878
    %v880 = vmul.f32 %v877, %v878
    %v881 = vadd.f32 %v823, %v879
    %v882 = vadd.f32 %v824, %v880
    %v883 = vstv %s84
    %v884 = vmul.f32 %v267, %v883
    %v885 = vmul.f32 %v268, %v883
    %v886 = vstv %s100
    %v887 = vmul.f32 %v271, %v886
    %v888 = vmul.f32 %v272, %v886
    %v889 = vadd.f32 %v884, %v887
    %v890 = vadd.f32 %v885, %v888
    %v891 = vstv %s116
    %v892 = vmul.f32 %v275, %v891
    %v893 = vmul.f32 %v276, %v891
    %v894 = vadd.f32 %v889, %v892
    %v895 = vadd.f32 %v890, %v893
    %v896 = vstv %s132
    %v897 = vmul.f32 %v279, %v896
    %v898 = vmul.f32 %v280, %v896
    %v899 = vadd.f32 %v894, %v897
    %v900 = vadd.f32 %v895, %v898
    %v901 = vstv %s148
    %v902 = vmul.f32 %v283, %v901
    %v903 = vmul.f32 %v284, %v901
    %v904 = vadd.f32 %v899, %v902
    %v905 = vadd.f32 %v900, %v903
    %v906 = vstv %s164
    %v907 = vmul.f32 %v287, %v906
    %v908 = vmul.f32 %v288, %v906
    %v909 = vadd.f32 %v904, %v907
    %v910 = vadd.f32 %v905, %v908
    %v911 = vstv %s180
    %v912 = vmul.f32 %v291, %v911
    %v913 = vmul.f32 %v292, %v911
    %v914 = vadd.f32 %v909, %v912
    %v915 = vadd.f32 %v910, %v913
    %v916 = vstv %s196
    %v917 = vmul.f32 %v295, %v916
    %v918 = vmul.f32 %v296, %v916
    %v919 = vadd.f32 %v914, %v917
    %v920 = vadd.f32 %v915, %v918
    %v921 = vstv %s212
    %v922 = vmul.f32 %v299, %v921
    %v923 = vmul.f32 %v300, %v921
    %v924 = vadd.f32 %v919, %v922
    %v925 = vadd.f32 %v920, %v923
    %v926 = vstv %s228
    %v927 = vmul.f32 %v303, %v926
    %v928 = vmul.f32 %v304, %v926
    %v929 = vadd.f32 %v924, %v927
    %v930 = vadd.f32 %v925, %v928
    %v931 = vstv %s244
    %v932 = vadd.f32 %v929, %v931
    %v933 = vadd.f32 %v930, %v931
    %v934 = vmax.f32 %v932, 0.0
    %v935 = vmax.f32 %v933, 0.0
    %v936 = vstv %s260
    %v937 = vmul.f32 %v934, %v936
    %v938 = vmul.f32 %v935, %v936
    %v939 = vadd.f32 %v881, %v937
    %v940 = vadd.f32 %v882, %v938
    %v941 = vstv %s85
    %v942 = vmul.f32 %v267, %v941
    %v943 = vmul.f32 %v268, %v941
    %v944 = vstv %s101
    %v945 = vmul.f32 %v271, %v944
    %v946 = vmul.f32 %v272, %v944
    %v947 = vadd.f32 %v942, %v945
    %v948 = vadd.f32 %v943, %v946
    %v949 = vstv %s117
    %v950 = vmul.f32 %v275, %v949
    %v951 = vmul.f32 %v276, %v949
    %v952 = vadd.f32 %v947, %v950
    %v953 = vadd.f32 %v948, %v951
    %v954 = vstv %s133
    %v955 = vmul.f32 %v279, %v954
    %v956 = vmul.f32 %v280, %v954
    %v957 = vadd.f32 %v952, %v955
    %v958 = vadd.f32 %v953, %v956
    %v959 = vstv %s149
    %v960 = vmul.f32 %v283, %v959
    %v961 = vmul.f32 %v284, %v959
    %v962 = vadd.f32 %v957, %v960
    %v963 = vadd.f32 %v958, %v961
    %v964 = vstv %s165
    %v965 = vmul.f32 %v287, %v964
    %v966 = vmul.f32 %v288, %v964
    %v967 = vadd.f32 %v962, %v965
    %v968 = vadd.f32 %v963, %v966
    %v969 = vstv %s181
    %v970 = vmul.f32 %v291, %v969
    %v971 = vmul.f32 %v292, %v969
    %v972 = vadd.f32 %v967, %v970
    %v973 = vadd.f32 %v968, %v971
    %v974 = vstv %s197
    %v975 = vmul.f32 %v295, %v974
    %v976 = vmul.f32 %v296, %v974
    %v977 = vadd.f32 %v972, %v975
    %v978 = vadd.f32 %v973, %v976
    %v979 = vstv %s213
    %v980 = vmul.f32 %v299, %v979
    %v981 = vmul.f32 %v300, %v979
    %v982 = vadd.f32 %v977, %v980
    %v983 = vadd.f32 %v978, %v981
    %v984 = vstv %s229
    %v985 = vmul.f32 %v303, %v984
    %v986 = vmul.f32 %v304, %v984
    %v987 = vadd.f32 %v982, %v985
    %v988 = vadd.f32 %v983, %v986
    %v989 = vstv %s245
    %v990 = vadd.f32 %v987, %v989
    %v991 = vadd.f32 %v988, %v989
    %v992 = vmax.f32 %v990, 0.0
    %v993 = vmax.f32 %v991, 0.0
    %v994 = vstv %s261
    %v995 = vmul.f32 %v992, %v994
    %v996 = vmul.f32 %v993, %v994
    %v997 = vadd.f32 %v939, %v995
    %v998 = vadd.f32 %v940, %v996
    %v999 = vstv %s86
    %v1000 = vmul.f32 %v267, %v999
    %v1001 = vmul.f32 %v268, %v999
    %v1002 = vstv %s102
    %v1003 = vmul.f32 %v271, %v1002
    %v1004 = vmul.f32 %v272, %v1002
    %v1005 = vadd.f32 %v1000, %v1003
    %v1006 = vadd.f32 %v1001, %v1004
    %v1007 = vstv %s118
    %v1008 = vmul.f32 %v275, %v1007
    %v1009 = vmul.f32 %v276, %v1007
    %v1010 = vadd.f32 %v1005, %v1008
    %v1011 = vadd.f32 %v1006, %v1009
    %v1012 = vstv %s134
    %v1013 = vmul.f32 %v279, %v1012
    %v1014 = vmul.f32 %v280, %v1012
    %v1015 = vadd.f32 %v1010, %v1013
    %v1016 = vadd.f32 %v1011, %v1014
    %v1017 = vstv %s150
    %v1018 = vmul.f32 %v283, %v1017
    %v1019 = vmul.f32 %v284, %v1017
    %v1020 = vadd.f32 %v1015, %v1018
    %v1021 = vadd.f32 %v1016, %v1019
    %v1022 = vstv %s166
    %v1023 = vmul.f32 %v287, %v1022
    %v1024 = vmul.f32 %v288, %v1022
    %v1025 = vadd.f32 %v1020, %v1023
    %v1026 = vadd.f32 %v1021, %v1024
    %v1027 = vstv %s182
    %v1028 = vmul.f32 %v291, %v1027
    %v1029 = vmul.f32 %v292, %v1027
    %v1030 = vadd.f32 %v1025, %v1028
    %v1031 = vadd.f32 %v1026, %v1029
    %v1032 = vstv %s198
    %v1033 = vmul.f32 %v295, %v1032
    %v1034 = vmul.f32 %v296, %v1032
    %v1035 = vadd.f32 %v1030, %v1033
    %v1036 = vadd.f32 %v1031, %v1034
    %v1037 = vstv %s214
    %v1038 = vmul.f32 %v299, %v1037
    %v1039 = vmul.f32 %v300, %v1037
    %v1040 = vadd.f32 %v1035, %v1038
    %v1041 = vadd.f32 %v1036, %v1039
    %v1042 = vstv %s230
    %v1043 = vmul.f32 %v303, %v1042
    %v1044 = vmul.f32 %v304, %v1042
    %v1045 = vadd.f32 %v1040, %v1043
    %v1046 = vadd.f32 %v1041, %v1044
    %v1047 = vstv %s246
    %v1048 = vadd.f32 %v1045, %v1047
    %v1049 = vadd.f32 %v1046, %v1047
    %v1050 = vmax.f32 %v1048, 0.0
    %v1051 = vmax.f32 %v1049, 0.0
    %v1052 = vstv %s262
    %v1053 = vmul.f32 %v1050, %v1052
    %v1054 = vmul.f32 %v1051, %v1052
    %v1055 = vadd.f32 %v997, %v1053
    %v1056 = vadd.f32 %v998, %v1054
    %v1057 = vstv %s87
    %v1058 = vmul.f32 %v267, %v1057
    %v1059 = vmul.f32 %v268, %v1057
    %v1060 = vstv %s103
    %v1061 = vmul.f32 %v271, %v1060
    %v1062 = vmul.f32 %v272, %v1060
    %v1063 = vadd.f32 %v1058, %v1061
    %v1064 = vadd.f32 %v1059, %v1062
    %v1065 = vstv %s119
    %v1066 = vmul.f32 %v275, %v1065
    %v1067 = vmul.f32 %v276, %v1065
    %v1068 = vadd.f32 %v1063, %v1066
    %v1069 = vadd.f32 %v1064, %v1067
    %v1070 = vstv %s135
    %v1071 = vmul.f32 %v279, %v1070
    %v1072 = vmul.f32 %v280, %v1070
    %v1073 = vadd.f32 %v1068, %v1071
    %v1074 = vadd.f32 %v1069, %v1072
    %v1075 = vstv %s151
    %v1076 = vmul.f32 %v283, %v1075
    %v1077 = vmul.f32 %v284, %v1075
    %v1078 = vadd.f32 %v1073, %v1076
    %v1079 = vadd.f32 %v1074, %v1077
    %v1080 = vstv %s167
    %v1081 = vmul.f32 %v287, %v1080
    %v1082 = vmul.f32 %v288, %v1080
    %v1083 = vadd.f32 %v1078, %v1081
    %v1084 = vadd.f32 %v1079, %v1082
    %v1085 = vstv %s183
    %v1086 = vmul.f32 %v291, %v1085
    %v1087 = vmul.f32 %v292, %v1085
    %v1088 = vadd.f32 %v1083, %v1086
    %v1089 = vadd.f32 %v1084, %v1087
    %v1090 = vstv %s199
    %v1091 = vmul.f32 %v295, %v1090
    %v1092 = vmul.f32 %v296, %v1090
    %v1093 = vadd.f32 %v1088, %v1091
    %v1094 = vadd.f32 %v1089, %v1092
    %v1095 = vstv %s215
    %v1096 = vmul.f32 %v299, %v1095
    %v1097 = vmul.f32 %v300, %v1095
    %v1098 = vadd.f32 %v1093, %v1096
    %v1099 = vadd.f32 %v1094, %v1097
    %v1100 = vstv %s231
    %v1101 = vmul.f32 %v303, %v1100
    %v1102 = vmul.f32 %v304, %v1100
    %v1103 = vadd.f32 %v1098, %v1101
    %v1104 = vadd.f32 %v1099, %v1102
    %v1105 = vstv %s247
    %v1106 = vadd.f32 %v1103, %v1105
    %v1107 = vadd.f32 %v1104, %v1105
    %v1108 = vmax.f32 %v1106, 0.0
    %v1109 = vmax.f32 %v1107, 0.0
    %v1110 = vstv %s263
    %v1111 = vmul.f32 %v1108, %v1110
    %v1112 = vmul.f32 %v1109, %v1110
    %v1113 = vadd.f32 %v1055, %v1111
    %v1114 = vadd.f32 %v1056, %v1112
    %v1115 = vstv %s88
    %v1116 = vmul.f32 %v267, %v1115
    %v1117 = vmul.f32 %v268, %v1115
    %v1118 = vstv %s104
    %v1119 = vmul.f32 %v271, %v1118
    %v1120 = vmul.f32 %v272, %v1118
    %v1121 = vadd.f32 %v1116, %v1119
    %v1122 = vadd.f32 %v1117, %v1120
    %v1123 = vstv %s120
    %v1124 = vmul.f32 %v275, %v1123
    %v1125 = vmul.f32 %v276, %v1123
    %v1126 = vadd.f32 %v1121, %v1124
    %v1127 = vadd.f32 %v1122, %v1125
    %v1128 = vstv %s136
    %v1129 = vmul.f32 %v279, %v1128
    %v1130 = vmul.f32 %v280, %v1128
    %v1131 = vadd.f32 %v1126, %v1129
    %v1132 = vadd.f32 %v1127, %v1130
    %v1133 = vstv %s152
    %v1134 = vmul.f32 %v283, %v1133
    %v1135 = vmul.f32 %v284, %v1133
    %v1136 = vadd.f32 %v1131, %v1134
    %v1137 = vadd.f32 %v1132, %v1135
    %v1138 = vstv %s168
    %v1139 = vmul.f32 %v287, %v1138
    %v1140 = vmul.f32 %v288, %v1138
    %v1141 = vadd.f32 %v1136, %v1139
    %v1142 = vadd.f32 %v1137, %v1140
    %v1143 = vstv %s184
    %v1144 = vmul.f32 %v291, %v1143
    %v1145 = vmul.f32 %v292, %v1143
    %v1146 = vadd.f32 %v1141, %v1144
    %v1147 = vadd.f32 %v1142, %v1145
    %v1148 = vstv %s200
    %v1149 = vmul.f32 %v295, %v1148
    %v1150 = vmul.f32 %v296, %v1148
    %v1151 = vadd.f32 %v1146, %v1149
    %v1152 = vadd.f32 %v1147, %v1150
    %v1153 = vstv %s216
    %v1154 = vmul.f32 %v299, %v1153
    %v1155 = vmul.f32 %v300, %v1153
    %v1156 = vadd.f32 %v1151, %v1154
    %v1157 = vadd.f32 %v1152, %v1155
    %v1158 = vstv %s232
    %v1159 = vmul.f32 %v303, %v1158
    %v1160 = vmul.f32 %v304, %v1158
    %v1161 = vadd.f32 %v1156, %v1159
    %v1162 = vadd.f32 %v1157, %v1160
    %v1163 = vstv %s248
    %v1164 = vadd.f32 %v1161, %v1163
    %v1165 = vadd.f32 %v1162, %v1163
    %v1166 = vmax.f32 %v1164, 0.0
    %v1167 = vmax.f32 %v1165, 0.0
    %v1168 = vstv %s264
    %v1169 = vmul.f32 %v1166, %v1168
    %v1170 = vmul.f32 %v1167, %v1168
    %v1171 = vadd.f32 %v1113, %v1169
    %v1172 = vadd.f32 %v1114, %v1170
    %v1173 = vstv %s89
    %v1174 = vmul.f32 %v267, %v1173
    %v1175 = vmul.f32 %v268, %v1173
    %v1176 = vstv %s105
    %v1177 = vmul.f32 %v271, %v1176
    %v1178 = vmul.f32 %v272, %v1176
    %v1179 = vadd.f32 %v1174, %v1177
    %v1180 = vadd.f32 %v1175, %v1178
    %v1181 = vstv %s121
    %v1182 = vmul.f32 %v275, %v1181
    %v1183 = vmul.f32 %v276, %v1181
    %v1184 = vadd.f32 %v1179, %v1182
    %v1185 = vadd.f32 %v1180, %v1183
    %v1186 = vstv %s137
    %v1187 = vmul.f32 %v279, %v1186
    %v1188 = vmul.f32 %v280, %v1186
    %v1189 = vadd.f32 %v1184, %v1187
    %v1190 = vadd.f32 %v1185, %v1188
    %v1191 = vstv %s153
    %v1192 = vmul.f32 %v283, %v1191
    %v1193 = vmul.f32 %v284, %v1191
    %v1194 = vadd.f32 %v1189, %v1192
    %v1195 = vadd.f32 %v1190, %v1193
    %v1196 = vstv %s169
    %v1197 = vmul.f32 %v287, %v1196
    %v1198 = vmul.f32 %v288, %v1196
    %v1199 = vadd.f32 %v1194, %v1197
    %v1200 = vadd.f32 %v1195, %v1198
    %v1201 = vstv %s185
    %v1202 = vmul.f32 %v291, %v1201
    %v1203 = vmul.f32 %v292, %v1201
    %v1204 = vadd.f32 %v1199, %v1202
    %v1205 = vadd.f32 %v1200, %v1203
    %v1206 = vstv %s201
    %v1207 = vmul.f32 %v295, %v1206
    %v1208 = vmul.f32 %v296, %v1206
    %v1209 = vadd.f32 %v1204, %v1207
    %v1210 = vadd.f32 %v1205, %v1208
    %v1211 = vstv %s217
    %v1212 = vmul.f32 %v299, %v1211
    %v1213 = vmul.f32 %v300, %v1211
    %v1214 = vadd.f32 %v1209, %v1212
    %v1215 = vadd.f32 %v1210, %v1213
    %v1216 = vstv %s233
    %v1217 = vmul.f32 %v303, %v1216
    %v1218 = vmul.f32 %v304, %v1216
    %v1219 = vadd.f32 %v1214, %v1217
    %v1220 = vadd.f32 %v1215, %v1218
    %v1221 = vstv %s249
    %v1222 = vadd.f32 %v1219, %v1221
    %v1223 = vadd.f32 %v1220, %v1221
    %v1224 = vmax.f32 %v1222, 0.0
    %v1225 = vmax.f32 %v1223, 0.0
    %v1226 = vstv %s265
    %v1227 = vmul.f32 %v1224, %v1226
    %v1228 = vmul.f32 %v1225, %v1226
    %v1229 = vadd.f32 %v1171, %v1227
    %v1230 = vadd.f32 %v1172, %v1228
    %v1231 = vstv %s266
    %v1232 = vadd.f32 %v1229, %v1231
    %v1233 = vadd.f32 %v1230, %v1231
    %1234 = vst [vmem:[#allocation11] sm:$0xff] %v1232
    %1235 = vst [vmem:[#allocation11 + $0x8] sm:$0xff] %v1233
    // Predicated region
    $region38: #{tpu_custom_call.1} parent=1 // pred_check
      _
    $region39: #{tpu_custom_call.1} parent=1 // pred_check_branch
      %1237 = sbr.rel (0) target = $region41
    $region40: #{tpu_custom_call.1} parent=1 // pred_region
      %1239 = vsyncadd [#allocation5], 0
      %s1240 = sshll.u32 [#allocation11], 4
      %s1241 = int_to_ptr.vmem [resolvable:$true] %s1240
      %s1242 = sshll.u32 %s5, 4
      %s1243 = int_to_ptr.hbm [resolvable:$true] %s1242
      %1248 = dma.vmem_to_hbm [thread:$0]  %s1241, 256, %s1243, [#allocation5], 128, 128, 8
    $region41: #{tpu_custom_call.1} parent=1 // pred_fallthru
      _
    // Predicated region
    $region42: #{tpu_custom_call.1} parent=1 // pred_check
      _
    $region43: #{tpu_custom_call.1} parent=1 // pred_check_branch
      %1250 = sbr.rel (0) target = $region45
    $region44: #{tpu_custom_call.1} parent=1 // pred_region
      %1252 = dma.done [#allocation5], 256
    $region45: #{tpu_custom_call.1} parent=1 // pred_fallthru
      _
    %1253 = vsyncpa [#allocation4], 1
    %1254 = vsyncpa [#allocation5], 1
    %1255 = vsyncpa [#allocation6], 1
    %1256 = vsyncpa [#allocation9], 1

</llo_original>
